<compile_context>
chip_gen: v7x
topology: tpu7x:2x2x1
jax: 0.10.0
libtpu: 0.0.40
codegen_flags: <defaults>
</compile_context>

<pallas_src>
import numpy as np
import jax
import jax.numpy as jnp
from jax.experimental import pallas as pl
from jax.experimental.pallas import tpu as pltpu

TAYLOR_ORDER = 12        # Horner Taylor order for expm of the scaled matrix
DEFAULT_SQUARINGS = 8    # fallback scaling exponent when inputs are traced
MAX_R_TILE = 2048        # lane tile for the spectator (untouched-qubit) dimension


def _choose_squarings(H_np, t_np):
    """Smallest s with ||(-i t H) / 2**s||_inf <= 1 (host side, concrete inputs only)."""
    row_sums = np.abs(H_np).sum(axis=1)            # (N, bh)
    h_norm = row_sums.max(axis=0)                  # (bh,) inf-norm bound per batch elem
    theta = float(np.max(np.abs(t_np) * h_norm))
    if not np.isfinite(theta) or theta <= 1.0:
        return 0
    return int(min(30, int(np.ceil(np.log2(theta)))))


def _make_expm_kernel(bt, taylor_order, squarings):
    """expm of BT embedded (2N,2N) generators per grid step (scaling & squaring)."""
    def kernel(m_ref, u_ref):
        n2 = m_ref.shape[1]
        eye = jnp.eye(n2, dtype=jnp.float32)
        for j in range(bt):                        # static unroll; stored per iteration
            m = m_ref[j]                           # (2N, 2N), already scaled by 2**-s
            # Horner Taylor: exp(m) ~ I + m(I + m/2(I + ... (I + m/T)))
            p = eye + m * (1.0 / taylor_order)
            for k in range(taylor_order - 1, 0, -1):
                p = eye + jnp.dot(m, p, preferred_element_type=jnp.float32) * (1.0 / k)
            for _ in range(squarings):             # undo the scaling: exp(A)=exp(A/2^s)^(2^s)
                p = jnp.dot(p, p, preferred_element_type=jnp.float32)
            u_ref[j] = p
    return kernel


def _apply_kernel(u_ref, s_ref, o_ref):
    # Embedded operator (2N,2N) applied to a lane tile of the stacked [real;imag] state.
    o_ref[0] = jnp.dot(u_ref[0], s_ref[0], preferred_element_type=jnp.float32)


def _hamevo_exp_forward(H, t, state, qubits, n_qubits):
    H = jnp.asarray(H, dtype=jnp.complex64)
    if H.ndim < 3:
        H = H[:, :, None]
    N = H.shape[0]
    bh = H.shape[2]
    k = len(qubits)
    assert N == 2 ** k, "H dimension must be 2**len(qubits)"
    n2 = 2 * N

    t = jnp.asarray(t, dtype=jnp.complex64).reshape(-1)
    bt = t.shape[0]
    if bt >= bh:
        t_evo = t[:bh]
    elif bt == 1:
        t_evo = jnp.broadcast_to(t[0], (bh,))
    else:
        t_evo = jnp.zeros((bh,), jnp.complex64).at[:bt].set(t)

    # --- adaptive scaling exponent (host side, when concrete) --------------------------
    try:
        squarings = _choose_squarings(np.asarray(jax.device_get(H)),
                                      np.asarray(jax.device_get(t_evo)))
    except Exception:
        squarings = DEFAULT_SQUARINGS  # TODO(synk): no norm adaptation under tracing

    # --- embedded, pre-scaled generators: M[b] = (-1j*t[b]/2**s) * H[...,b] ------------
    coef = (-1j * t_evo) * (2.0 ** (-squarings))                 # fold 2**-s: free
    M = jnp.moveaxis(H, -1, 0) * coef[:, None, None]             # (bh, N, N) complex
    Mr = jnp.real(M).astype(jnp.float32)
    Mi = jnp.imag(M).astype(jnp.float32)
    M_emb = jnp.concatenate(
        [jnp.concatenate([Mr, -Mi], axis=-1),
         jnp.concatenate([Mi, Mr], axis=-1)], axis=-2)           # (bh, 2N, 2N) real

    # --- kernel A: batched matrix exponential ------------------------------------------
    BT = max(1, min(bh, 8, 128 // n2))
    bh_pad = ((bh + BT - 1) // BT) * BT
    if bh_pad != bh:
        M_emb = jnp.pad(M_emb, ((0, bh_pad - bh), (0, 0), (0, 0)))   # exp(0)=I, discarded

    U_emb = pl.pallas_call(
        _make_expm_kernel(BT, TAYLOR_ORDER, squarings),
        out_shape=jax.ShapeDtypeStruct((bh_pad, n2, n2), jnp.float32),
        grid_spec=pltpu.PrefetchScalarGridSpec(
            num_scalar_prefetch=0,
            grid=(bh_pad // BT,),
            in_specs=[pl.BlockSpec((BT, n2, n2), lambda b: (b, 0, 0))],
            out_specs=pl.BlockSpec((BT, n2, n2), lambda b: (b, 0, 0)),
        ),
        compiler_params=pltpu.CompilerParams(dimension_semantics=("parallel",)),
    )(M_emb)
    U_emb = U_emb[:bh]

    # --- kernel B: apply the evolution operator to the state ---------------------------
    state = jnp.asarray(state, dtype=jnp.complex64)
    batch = state.shape[-1]
    assert batch == bh, "state batch must equal Hamiltonian batch (pyqtorch einsum contract)"

    rest = [q for q in range(n_qubits) if q not in qubits]
    perm = list(qubits) + rest + [n_qubits]
    R = 2 ** (n_qubits - k)
    s_perm = jnp.transpose(state, perm).reshape(N, R, batch)
    s_b = jnp.moveaxis(s_perm, -1, 0)                            # (bh, N, R)
    S_stack = jnp.concatenate([jnp.real(s_b), jnp.imag(s_b)], axis=1).astype(jnp.float32)

    TR = R if R <= MAX_R_TILE else MAX_R_TILE                    # lane tile (mult. of 128
    Rp = ((R + TR - 1) // TR) * TR                               #  whenever R is tiled)
    if Rp != R:
        S_stack = jnp.pad(S_stack, ((0, 0), (0, 0), (0, Rp - R)))

    O_stack = pl.pallas_call(
        _apply_kernel,
        out_shape=jax.ShapeDtypeStruct((bh, n2, Rp), jnp.float32),
        grid_spec=pltpu.PrefetchScalarGridSpec(
            num_scalar_prefetch=0,
            grid=(bh, Rp // TR),
            in_specs=[pl.BlockSpec((1, n2, n2), lambda b, r: (b, 0, 0)),
                      pl.BlockSpec((1, n2, TR), lambda b, r: (b, 0, r))],
            out_specs=pl.BlockSpec((1, n2, TR), lambda b, r: (b, 0, r)),
        ),
        compiler_params=pltpu.CompilerParams(
            dimension_semantics=("parallel", "parallel")),
    )(U_emb, S_stack)

    O_stack = O_stack[:, :, :R]
    out_b = (O_stack[:, :N, :].astype(jnp.complex64)
             + 1j * O_stack[:, N:, :].astype(jnp.complex64))     # (bh, N, R)
    out = jnp.moveaxis(out_b, 0, -1).reshape([2] * n_qubits + [batch])
    inv_perm = tuple(int(i) for i in np.argsort(perm))
    return jnp.transpose(out, inv_perm)


class HamiltonianEvolution:
    """JAX/Pallas port of pyqtorch's HamiltonianEvolution (EXP / EIG strategies)."""

    def __init__(self, qubits, n_qubits, n_steps=100, hamevo_type="EXP"):
        self.qubits = list(qubits)
        self.n_qubits = n_qubits
        self.n_steps = n_steps
        if isinstance(hamevo_type, str):
            hamevo_type = hamevo_type.upper()
        if hamevo_type not in ("EXP", "EIG"):
            # TODO(synk): RK4 (HamEvo base class) path not implemented as a Pallas kernel.
            raise NotImplementedError("Only EXP/EIG Hamiltonian evolution is implemented.")
        self.hamevo_type = hamevo_type

    def __call__(self, H, t, state):
        return self.forward(H, t, state)

    def forward(self, H, t, state):
        # EIG and EXP produce the same evolution operator; both go through the expm kernel.
        return _hamevo_exp_forward(H, t, state, self.qubits, self.n_qubits)


# ---------------- reference (numpy, float64) ----------------

def _ref_apply_batch_gate(state, mat, qubits, n_qubits, batch_size):
    mat = mat.reshape([2] * (2 * len(qubits)) + [batch_size])
    letters = "abcdefghijklmnopqrstuvwxyzABCDEFGHIJKLMNOPQRSTUVWXYZ"
    state_idx = list(letters[:n_qubits])
    batch_idx = letters[n_qubits]
    out_q_idx = list(letters[n_qubits + 1: n_qubits + 1 + len(qubits)])
    mat_idx = out_q_idx + [state_idx[q] for q in qubits] + [batch_idx]
    out_idx = state_idx.copy()
    for pos, q in enumerate(qubits):
        out_idx[q] = out_q_idx[pos]
    eq = "".join(mat_idx) + "," + "".join(state_idx) + batch_idx + "->" + "".join(out_idx) + batch_idx
    return np.einsum(eq, mat, state)


def _reference_forward(H, t, state, qubits, n_qubits):
    H = np.asarray(H, dtype=np.complex128)
    if H.ndim < 3:
        H = H[:, :, None]
    bh = H.shape[2]
    t = np.asarray(t, dtype=np.complex128).reshape(-1)
    bt = t.shape[0]
    if bt >= bh:
        t_evo = t[:bh]
    elif bt == 1:
        t_evo = np.full((bh,), t[0], dtype=np.complex128)
    else:
        t_evo = np.zeros((bh,), np.complex128)
        t_evo[:bt] = t
    N = H.shape[0]
    U = np.zeros((N, N, bh), np.complex128)
    for b in range(bh):
        w, V = np.linalg.eigh(H[:, :, b])
        U[:, :, b] = V @ np.diag(np.exp(-1j * t_evo[b] * w)) @ V.conj().T
    return _ref_apply_batch_gate(np.asarray(state, np.complex128), U, qubits, n_qubits, bh)


# ---------------- demo ----------------

if __name__ == "__main__":
    key = jax.random.PRNGKey(0)
    n_qubits = 6
    qubits = [1, 3, 4]            # operator support -> N = 8, spectator dim R = 8
    batch = 2                     # batch of Hamiltonians == batch of states
    N = 2 ** len(qubits)

    k1, k2, k3, k4 = jax.random.split(key, 4)
    a = jax.random.normal(k1, (N, N, batch), dtype=jnp.float32)
    b = jax.random.normal(k2, (N, N, batch), dtype=jnp.float32)
    Hc = (a + 1j * b).astype(jnp.complex64)
    H = 0.5 * (Hc + jnp.conjugate(jnp.transpose(Hc, (1, 0, 2))))   # Hermitian per batch

    t = jnp.array([0.15, 0.35], dtype=jnp.float32)

    sr = jax.random.normal(k3, (2,) * n_qubits + (batch,), dtype=jnp.float32)
    si = jax.random.normal(k4, (2,) * n_qubits + (batch,), dtype=jnp.float32)
    state = (sr + 1j * si).astype(jnp.complex64)
    norm = jnp.sqrt(jnp.sum(jnp.abs(state) ** 2,
                            axis=tuple(range(n_qubits)), keepdims=True))
    state = state / norm

    module = HamiltonianEvolution(qubits, n_qubits, n_steps=100, hamevo_type="EXP")
    out = module(H, t, state)
    out = jax.block_until_ready(out)

    ref = _reference_forward(np.asarray(H), np.asarray(t), np.asarray(state), qubits, n_qubits)
    np.testing.assert_allclose(np.asarray(out), ref, atol=1e-3, rtol=1e-3)

    print("KERNEL_OK")
</pallas_src>

<mosaic_0001>
module attributes {stable_mosaic.version = 11 : i64} {
  func.func @kernel(%arg0: i32, %arg1: memref<2x16x16xf32, #tpu.memory_space<vmem>>, %arg2: memref<2x16x16xf32, #tpu.memory_space<vmem>>) attributes {dimension_semantics = [#tpu.dimension_semantics<parallel>], iteration_bounds = array<i64: 1>, scalar_prefetch = 0 : i64, scratch_operands = 0 : i64, tpu.core_type = #tpu.core_type<tc>, window_params = [{transform_indices = @transform_0, window_bounds = array<i64: 2, 16, 16>}, {transform_indices = @transform_1, window_bounds = array<i64: 2, 16, 16>}]} {
    %0 = tpu.iota {dimensions = array<i32: 0>} : vector<16x16xi32>
    %1 = tpu.iota {dimensions = array<i32: 1>} : vector<16x16xi32>
    %c0_i32 = arith.constant 0 : i32
    %2 = vector.broadcast %c0_i32 : i32 to vector<16x16xi32>
    %3 = arith.addi %0, %2 : vector<16x16xi32>
    %4 = arith.cmpi eq, %3, %1 : vector<16x16xi32>
    %5 = arith.extui %4 : vector<16x16xi1> to vector<16x16xi32>
    %6 = arith.sitofp %5 : vector<16x16xi32> to vector<16x16xf32>
    %c0 = arith.constant 0 : index
    %c0_0 = arith.constant 0 : index
    %c0_1 = arith.constant 0 : index
    %7 = vector.load %arg1[%c0, %c0_0, %c0_1] : memref<2x16x16xf32, #tpu.memory_space<vmem>>, vector<1x16x16xf32>
    %8 = vector.shape_cast %7 : vector<1x16x16xf32> to vector<16x16xf32>
    %cst = arith.constant 0.0833333358 : f32
    %9 = vector.broadcast %cst : f32 to vector<16x16xf32>
    %10 = arith.mulf %8, %9 : vector<16x16xf32>
    %11 = arith.addf %6, %10 : vector<16x16xf32>
    %cst_2 = arith.constant dense<0.000000e+00> : vector<16x16xf32>
    %12 = tpu.matmul %8, %11, %cst_2 {dimension_numbers = #tpu.dot_dimension_numbers<[1], [0], [0], [1], [0, 0, 1, 1], [], []>} : vector<16x16xf32>, vector<16x16xf32>, vector<16x16xf32> -> vector<16x16xf32>
    %cst_3 = arith.constant 0.0909090936 : f32
    %13 = vector.broadcast %cst_3 : f32 to vector<16x16xf32>
    %14 = arith.mulf %12, %13 : vector<16x16xf32>
    %15 = arith.addf %6, %14 : vector<16x16xf32>
    %cst_4 = arith.constant dense<0.000000e+00> : vector<16x16xf32>
    %16 = tpu.matmul %8, %15, %cst_4 {dimension_numbers = #tpu.dot_dimension_numbers<[1], [0], [0], [1], [0, 0, 1, 1], [], []>} : vector<16x16xf32>, vector<16x16xf32>, vector<16x16xf32> -> vector<16x16xf32>
    %cst_5 = arith.constant 1.000000e-01 : f32
    %17 = vector.broadcast %cst_5 : f32 to vector<16x16xf32>
    %18 = arith.mulf %16, %17 : vector<16x16xf32>
    %19 = arith.addf %6, %18 : vector<16x16xf32>
    %cst_6 = arith.constant dense<0.000000e+00> : vector<16x16xf32>
    %20 = tpu.matmul %8, %19, %cst_6 {dimension_numbers = #tpu.dot_dimension_numbers<[1], [0], [0], [1], [0, 0, 1, 1], [], []>} : vector<16x16xf32>, vector<16x16xf32>, vector<16x16xf32> -> vector<16x16xf32>
    %cst_7 = arith.constant 0.111111112 : f32
    %21 = vector.broadcast %cst_7 : f32 to vector<16x16xf32>
    %22 = arith.mulf %20, %21 : vector<16x16xf32>
    %23 = arith.addf %6, %22 : vector<16x16xf32>
    %cst_8 = arith.constant dense<0.000000e+00> : vector<16x16xf32>
    %24 = tpu.matmul %8, %23, %cst_8 {dimension_numbers = #tpu.dot_dimension_numbers<[1], [0], [0], [1], [0, 0, 1, 1], [], []>} : vector<16x16xf32>, vector<16x16xf32>, vector<16x16xf32> -> vector<16x16xf32>
    %cst_9 = arith.constant 1.250000e-01 : f32
    %25 = vector.broadcast %cst_9 : f32 to vector<16x16xf32>
    %26 = arith.mulf %24, %25 : vector<16x16xf32>
    %27 = arith.addf %6, %26 : vector<16x16xf32>
    %cst_10 = arith.constant dense<0.000000e+00> : vector<16x16xf32>
    %28 = tpu.matmul %8, %27, %cst_10 {dimension_numbers = #tpu.dot_dimension_numbers<[1], [0], [0], [1], [0, 0, 1, 1], [], []>} : vector<16x16xf32>, vector<16x16xf32>, vector<16x16xf32> -> vector<16x16xf32>
    %cst_11 = arith.constant 0.142857149 : f32
    %29 = vector.broadcast %cst_11 : f32 to vector<16x16xf32>
    %30 = arith.mulf %28, %29 : vector<16x16xf32>
    %31 = arith.addf %6, %30 : vector<16x16xf32>
    %cst_12 = arith.constant dense<0.000000e+00> : vector<16x16xf32>
    %32 = tpu.matmul %8, %31, %cst_12 {dimension_numbers = #tpu.dot_dimension_numbers<[1], [0], [0], [1], [0, 0, 1, 1], [], []>} : vector<16x16xf32>, vector<16x16xf32>, vector<16x16xf32> -> vector<16x16xf32>
    %cst_13 = arith.constant 0.166666672 : f32
    %33 = vector.broadcast %cst_13 : f32 to vector<16x16xf32>
    %34 = arith.mulf %32, %33 : vector<16x16xf32>
    %35 = arith.addf %6, %34 : vector<16x16xf32>
    %cst_14 = arith.constant dense<0.000000e+00> : vector<16x16xf32>
    %36 = tpu.matmul %8, %35, %cst_14 {dimension_numbers = #tpu.dot_dimension_numbers<[1], [0], [0], [1], [0, 0, 1, 1], [], []>} : vector<16x16xf32>, vector<16x16xf32>, vector<16x16xf32> -> vector<16x16xf32>
    %cst_15 = arith.constant 2.000000e-01 : f32
    %37 = vector.broadcast %cst_15 : f32 to vector<16x16xf32>
    %38 = arith.mulf %36, %37 : vector<16x16xf32>
    %39 = arith.addf %6, %38 : vector<16x16xf32>
    %cst_16 = arith.constant dense<0.000000e+00> : vector<16x16xf32>
    %40 = tpu.matmul %8, %39, %cst_16 {dimension_numbers = #tpu.dot_dimension_numbers<[1], [0], [0], [1], [0, 0, 1, 1], [], []>} : vector<16x16xf32>, vector<16x16xf32>, vector<16x16xf32> -> vector<16x16xf32>
    %cst_17 = arith.constant 2.500000e-01 : f32
    %41 = vector.broadcast %cst_17 : f32 to vector<16x16xf32>
    %42 = arith.mulf %40, %41 : vector<16x16xf32>
    %43 = arith.addf %6, %42 : vector<16x16xf32>
    %cst_18 = arith.constant dense<0.000000e+00> : vector<16x16xf32>
    %44 = tpu.matmul %8, %43, %cst_18 {dimension_numbers = #tpu.dot_dimension_numbers<[1], [0], [0], [1], [0, 0, 1, 1], [], []>} : vector<16x16xf32>, vector<16x16xf32>, vector<16x16xf32> -> vector<16x16xf32>
    %cst_19 = arith.constant 0.333333343 : f32
    %45 = vector.broadcast %cst_19 : f32 to vector<16x16xf32>
    %46 = arith.mulf %44, %45 : vector<16x16xf32>
    %47 = arith.addf %6, %46 : vector<16x16xf32>
    %cst_20 = arith.constant dense<0.000000e+00> : vector<16x16xf32>
    %48 = tpu.matmul %8, %47, %cst_20 {dimension_numbers = #tpu.dot_dimension_numbers<[1], [0], [0], [1], [0, 0, 1, 1], [], []>} : vector<16x16xf32>, vector<16x16xf32>, vector<16x16xf32> -> vector<16x16xf32>
    %cst_21 = arith.constant 5.000000e-01 : f32
    %49 = vector.broadcast %cst_21 : f32 to vector<16x16xf32>
    %50 = arith.mulf %48, %49 : vector<16x16xf32>
    %51 = arith.addf %6, %50 : vector<16x16xf32>
    %cst_22 = arith.constant dense<0.000000e+00> : vector<16x16xf32>
    %52 = tpu.matmul %8, %51, %cst_22 {dimension_numbers = #tpu.dot_dimension_numbers<[1], [0], [0], [1], [0, 0, 1, 1], [], []>} : vector<16x16xf32>, vector<16x16xf32>, vector<16x16xf32> -> vector<16x16xf32>
    %cst_23 = arith.constant 1.000000e+00 : f32
    %53 = vector.broadcast %cst_23 : f32 to vector<16x16xf32>
    %54 = arith.mulf %52, %53 : vector<16x16xf32>
    %55 = arith.addf %6, %54 : vector<16x16xf32>
    %cst_24 = arith.constant dense<0.000000e+00> : vector<16x16xf32>
    %56 = tpu.matmul %55, %55, %cst_24 {dimension_numbers = #tpu.dot_dimension_numbers<[1], [0], [0], [1], [0, 0, 1, 1], [], []>} : vector<16x16xf32>, vector<16x16xf32>, vector<16x16xf32> -> vector<16x16xf32>
    %cst_25 = arith.constant dense<0.000000e+00> : vector<16x16xf32>
    %57 = tpu.matmul %56, %56, %cst_25 {dimension_numbers = #tpu.dot_dimension_numbers<[1], [0], [0], [1], [0, 0, 1, 1], [], []>} : vector<16x16xf32>, vector<16x16xf32>, vector<16x16xf32> -> vector<16x16xf32>
    %c0_26 = arith.constant 0 : index
    %c0_27 = arith.constant 0 : index
    %c0_28 = arith.constant 0 : index
    %58 = vector.load %arg2[%c0_26, %c0_27, %c0_28] : memref<2x16x16xf32, #tpu.memory_space<vmem>>, vector<1x16x16xf32>
    %59 = vector.shape_cast %58 : vector<1x16x16xf32> to vector<16x16xf32>
    %60 = vector.shape_cast %57 : vector<16x16xf32> to vector<1x16x16xf32>
    tpu.vector_store %arg2[%c0_26, %c0_27, %c0_28], %60 {strides = array<i32>} : memref<2x16x16xf32, #tpu.memory_space<vmem>>, vector<1x16x16xf32>,
    %c1 = arith.constant 1 : index
    %c0_29 = arith.constant 0 : index
    %c0_30 = arith.constant 0 : index
    %61 = vector.load %arg1[%c1, %c0_29, %c0_30] : memref<2x16x16xf32, #tpu.memory_space<vmem>>, vector<1x16x16xf32>
    %62 = vector.shape_cast %61 : vector<1x16x16xf32> to vector<16x16xf32>
    %cst_31 = arith.constant 0.0833333358 : f32
    %63 = vector.broadcast %cst_31 : f32 to vector<16x16xf32>
    %64 = arith.mulf %62, %63 : vector<16x16xf32>
    %65 = arith.addf %6, %64 : vector<16x16xf32>
    %cst_32 = arith.constant dense<0.000000e+00> : vector<16x16xf32>
    %66 = tpu.matmul %62, %65, %cst_32 {dimension_numbers = #tpu.dot_dimension_numbers<[1], [0], [0], [1], [0, 0, 1, 1], [], []>} : vector<16x16xf32>, vector<16x16xf32>, vector<16x16xf32> -> vector<16x16xf32>
    %cst_33 = arith.constant 0.0909090936 : f32
    %67 = vector.broadcast %cst_33 : f32 to vector<16x16xf32>
    %68 = arith.mulf %66, %67 : vector<16x16xf32>
    %69 = arith.addf %6, %68 : vector<16x16xf32>
    %cst_34 = arith.constant dense<0.000000e+00> : vector<16x16xf32>
    %70 = tpu.matmul %62, %69, %cst_34 {dimension_numbers = #tpu.dot_dimension_numbers<[1], [0], [0], [1], [0, 0, 1, 1], [], []>} : vector<16x16xf32>, vector<16x16xf32>, vector<16x16xf32> -> vector<16x16xf32>
    %cst_35 = arith.constant 1.000000e-01 : f32
    %71 = vector.broadcast %cst_35 : f32 to vector<16x16xf32>
    %72 = arith.mulf %70, %71 : vector<16x16xf32>
    %73 = arith.addf %6, %72 : vector<16x16xf32>
    %cst_36 = arith.constant dense<0.000000e+00> : vector<16x16xf32>
    %74 = tpu.matmul %62, %73, %cst_36 {dimension_numbers = #tpu.dot_dimension_numbers<[1], [0], [0], [1], [0, 0, 1, 1], [], []>} : vector<16x16xf32>, vector<16x16xf32>, vector<16x16xf32> -> vector<16x16xf32>
    %cst_37 = arith.constant 0.111111112 : f32
    %75 = vector.broadcast %cst_37 : f32 to vector<16x16xf32>
    %76 = arith.mulf %74, %75 : vector<16x16xf32>
    %77 = arith.addf %6, %76 : vector<16x16xf32>
    %cst_38 = arith.constant dense<0.000000e+00> : vector<16x16xf32>
    %78 = tpu.matmul %62, %77, %cst_38 {dimension_numbers = #tpu.dot_dimension_numbers<[1], [0], [0], [1], [0, 0, 1, 1], [], []>} : vector<16x16xf32>, vector<16x16xf32>, vector<16x16xf32> -> vector<16x16xf32>
    %cst_39 = arith.constant 1.250000e-01 : f32
    %79 = vector.broadcast %cst_39 : f32 to vector<16x16xf32>
    %80 = arith.mulf %78, %79 : vector<16x16xf32>
    %81 = arith.addf %6, %80 : vector<16x16xf32>
    %cst_40 = arith.constant dense<0.000000e+00> : vector<16x16xf32>
    %82 = tpu.matmul %62, %81, %cst_40 {dimension_numbers = #tpu.dot_dimension_numbers<[1], [0], [0], [1], [0, 0, 1, 1], [], []>} : vector<16x16xf32>, vector<16x16xf32>, vector<16x16xf32> -> vector<16x16xf32>
    %cst_41 = arith.constant 0.142857149 : f32
    %83 = vector.broadcast %cst_41 : f32 to vector<16x16xf32>
    %84 = arith.mulf %82, %83 : vector<16x16xf32>
    %85 = arith.addf %6, %84 : vector<16x16xf32>
    %cst_42 = arith.constant dense<0.000000e+00> : vector<16x16xf32>
    %86 = tpu.matmul %62, %85, %cst_42 {dimension_numbers = #tpu.dot_dimension_numbers<[1], [0], [0], [1], [0, 0, 1, 1], [], []>} : vector<16x16xf32>, vector<16x16xf32>, vector<16x16xf32> -> vector<16x16xf32>
    %cst_43 = arith.constant 0.166666672 : f32
    %87 = vector.broadcast %cst_43 : f32 to vector<16x16xf32>
    %88 = arith.mulf %86, %87 : vector<16x16xf32>
    %89 = arith.addf %6, %88 : vector<16x16xf32>
    %cst_44 = arith.constant dense<0.000000e+00> : vector<16x16xf32>
    %90 = tpu.matmul %62, %89, %cst_44 {dimension_numbers = #tpu.dot_dimension_numbers<[1], [0], [0], [1], [0, 0, 1, 1], [], []>} : vector<16x16xf32>, vector<16x16xf32>, vector<16x16xf32> -> vector<16x16xf32>
    %cst_45 = arith.constant 2.000000e-01 : f32
    %91 = vector.broadcast %cst_45 : f32 to vector<16x16xf32>
    %92 = arith.mulf %90, %91 : vector<16x16xf32>
    %93 = arith.addf %6, %92 : vector<16x16xf32>
    %cst_46 = arith.constant dense<0.000000e+00> : vector<16x16xf32>
    %94 = tpu.matmul %62, %93, %cst_46 {dimension_numbers = #tpu.dot_dimension_numbers<[1], [0], [0], [1], [0, 0, 1, 1], [], []>} : vector<16x16xf32>, vector<16x16xf32>, vector<16x16xf32> -> vector<16x16xf32>
    %cst_47 = arith.constant 2.500000e-01 : f32
    %95 = vector.broadcast %cst_47 : f32 to vector<16x16xf32>
    %96 = arith.mulf %94, %95 : vector<16x16xf32>
    %97 = arith.addf %6, %96 : vector<16x16xf32>
    %cst_48 = arith.constant dense<0.000000e+00> : vector<16x16xf32>
    %98 = tpu.matmul %62, %97, %cst_48 {dimension_numbers = #tpu.dot_dimension_numbers<[1], [0], [0], [1], [0, 0, 1, 1], [], []>} : vector<16x16xf32>, vector<16x16xf32>, vector<16x16xf32> -> vector<16x16xf32>
    %cst_49 = arith.constant 0.333333343 : f32
    %99 = vector.broadcast %cst_49 : f32 to vector<16x16xf32>
    %100 = arith.mulf %98, %99 : vector<16x16xf32>
    %101 = arith.addf %6, %100 : vector<16x16xf32>
    %cst_50 = arith.constant dense<0.000000e+00> : vector<16x16xf32>
    %102 = tpu.matmul %62, %101, %cst_50 {dimension_numbers = #tpu.dot_dimension_numbers<[1], [0], [0], [1], [0, 0, 1, 1], [], []>} : vector<16x16xf32>, vector<16x16xf32>, vector<16x16xf32> -> vector<16x16xf32>
    %cst_51 = arith.constant 5.000000e-01 : f32
    %103 = vector.broadcast %cst_51 : f32 to vector<16x16xf32>
    %104 = arith.mulf %102, %103 : vector<16x16xf32>
    %105 = arith.addf %6, %104 : vector<16x16xf32>
    %cst_52 = arith.constant dense<0.000000e+00> : vector<16x16xf32>
    %106 = tpu.matmul %62, %105, %cst_52 {dimension_numbers = #tpu.dot_dimension_numbers<[1], [0], [0], [1], [0, 0, 1, 1], [], []>} : vector<16x16xf32>, vector<16x16xf32>, vector<16x16xf32> -> vector<16x16xf32>
    %cst_53 = arith.constant 1.000000e+00 : f32
    %107 = vector.broadcast %cst_53 : f32 to vector<16x16xf32>
    %108 = arith.mulf %106, %107 : vector<16x16xf32>
    %109 = arith.addf %6, %108 : vector<16x16xf32>
    %cst_54 = arith.constant dense<0.000000e+00> : vector<16x16xf32>
    %110 = tpu.matmul %109, %109, %cst_54 {dimension_numbers = #tpu.dot_dimension_numbers<[1], [0], [0], [1], [0, 0, 1, 1], [], []>} : vector<16x16xf32>, vector<16x16xf32>, vector<16x16xf32> -> vector<16x16xf32>
    %cst_55 = arith.constant dense<0.000000e+00> : vector<16x16xf32>
    %111 = tpu.matmul %110, %110, %cst_55 {dimension_numbers = #tpu.dot_dimension_numbers<[1], [0], [0], [1], [0, 0, 1, 1], [], []>} : vector<16x16xf32>, vector<16x16xf32>, vector<16x16xf32> -> vector<16x16xf32>
    %c1_56 = arith.constant 1 : index
    %c0_57 = arith.constant 0 : index
    %c0_58 = arith.constant 0 : index
    %112 = vector.load %arg2[%c1_56, %c0_57, %c0_58] : memref<2x16x16xf32, #tpu.memory_space<vmem>>, vector<1x16x16xf32>
    %113 = vector.shape_cast %112 : vector<1x16x16xf32> to vector<16x16xf32>
    %114 = vector.shape_cast %111 : vector<16x16xf32> to vector<1x16x16xf32>
    tpu.vector_store %arg2[%c1_56, %c0_57, %c0_58], %114 {strides = array<i32>} : memref<2x16x16xf32, #tpu.memory_space<vmem>>, vector<1x16x16xf32>,
    return
  }
  func.func @transform_0(%arg0: i32) -> (i32, i32, i32) {
    %c0_i32 = arith.constant 0 : i32
    %c0_i32_0 = arith.constant 0 : i32
    %c0_i32_1 = arith.constant 0 : i32
    return %arg0, %c0_i32, %c0_i32_0 : i32, i32, i32
  }
  func.func @transform_1(%arg0: i32) -> (i32, i32, i32) {
    %c0_i32 = arith.constant 0 : i32
    %c0_i32_0 = arith.constant 0 : i32
    %c0_i32_1 = arith.constant 0 : i32
    return %arg0, %c0_i32, %c0_i32_0 : i32, i32, i32
  }
}

</mosaic_0001>

<llo_original>
// kernel: tpu_custom_call.1
$region0: #{tpu_custom_call.1}
  #allocation0 [shape = 'u32[]', space=smem, size = 0x4, offset = 0x4, fixed_abs, tag = 'smem constant byte address 0x4 - core index']
  #allocation1 [shape = 'u32[144,128]{1,0:T(1,128)}', space=vmem, size = 0x12000, scoped, tag = 'internal scratch']
  %s0 = inlined_call_operand.hbm [shape: f32[2,16,16], index: 0, kind: input, shape index: {}]
  %s1 = inlined_call_operand.hbm [shape: f32[2,16,16], index: 1, kind: output, shape index: {}]
  %s2 = sld [smem:[#allocation0]]
  $region18: #{tpu_custom_call.1} parent=0
    _
  %s4 = ssub.s32 1, %s2
  %s5 = scalar_select 0, %s4, %s2
  $region1: #{tpu_custom_call.1} parent=0
    #allocation2 [shape = 'u8[16384]{0}', space=vmem, size = 0x4000, scoped, tag = 'input window, operand 0, single buffered']
    #allocation3 [shape = 's32[1]{0}', space=sflag, size = 0x4, scoped, tag = 'scoped memory for tpu_custom_call.1']
    #allocation4 [shape = 's32[1]{0}', space=sflag, size = 0x4, scoped, tag = 'scoped memory for tpu_custom_call.1']
    #allocation5 [shape = 'u8[16384]{0}', space=vmem, size = 0x4000, scoped, tag = 'output window, operand 0, single buffered']
    %6 = vsyncpa [#allocation3], 0
    %7 = vsyncpa [#allocation4], 0
    // Predicated region
    $region2: #{tpu_custom_call.1} parent=1 // pred_check
      _
    $region3: #{tpu_custom_call.1} parent=1 // pred_check_branch
      %9 = sbr.rel (0) target = $region5
    $region4: #{tpu_custom_call.1} parent=1 // pred_region
      %s11 = ssub.s32 512, 512
      %12 = vsyncadd [#allocation3], %s11
      %s13 = sshll.u32 [#allocation2], 4
      %s14 = int_to_ptr.vmem [resolvable:$true] %s13
      %19 = dma.hbm_to_vmem [thread:$0]  %s0, 512, %s14, [#allocation3], 128, 128, 8
    $region5: #{tpu_custom_call.1} parent=1 // pred_fallthru
      _
    // Predicated region
    $region6: #{tpu_custom_call.1} parent=1 // pred_check
      _
    $region7: #{tpu_custom_call.1} parent=1 // pred_check_branch
      %21 = sbr.rel (0) target = $region9
    $region8: #{tpu_custom_call.1} parent=1 // pred_region
      %22 = dma.done [#allocation3], 512
    $region9: #{tpu_custom_call.1} parent=1 // pred_fallthru
      _
    %v23 = vlaneseq
    %v24 = vshrl.u32 %v23, 7
    %v25 = vadd.s32 %v24, 8
    %v26 = vlaneseq
    %v27 = vand.u32 %v26, 127
    %vm28 = vcmp.eq.s32.totalorder %v24, %v27
    %vm29 = vcmp.eq.s32.totalorder %v25, %v27
    %v30 = vsel %vm28, 1, 0
    %v31 = vsel %vm29, 1, 0
    %v32 = vcvt.s32.f32 %v30
    %v33 = vcvt.s32.f32 %v31
    %v34 = vld [vmem:[#allocation2] sm:$0xff]
    %v35 = vld [vmem:[#allocation2 + $0x8] sm:$0xff]
    %v36 = vmul.f32 %v34, 0.083333336
    %v37 = vmul.f32 %v35, 0.083333336
    %v38 = vadd.f32 %v32, %v36
    %v39 = vadd.f32 %v33, %v37
    %vm40 = vcmask 130048
    %v42 = vsel %vm40, %v34, 0
    %v45 = vsel %vm40, %v35, 0
    %47 = vmatprep.subr.mxu0 0.0
    %48 = vmatpush1.msra.mxu0 %v38
    %49 = vmatprep.subr.mxu0 0.0
    %50 = vmatpush1.msra.mxu0 %v39
    %51 = vmatprep.subr.mxu0 0.0
    %52 = vmatpush1.msra.mxu0 0.0
    %53 = vmatprep.subr.mxu0 0.0
    %54 = vmatpush1.msra.mxu0 0.0
    %55 = vmatprep.subr.mxu0 0.0
    %56 = vmatpush1.msra.mxu0 0.0
    %57 = vmatprep.subr.mxu0 0.0
    %58 = vmatpush1.msra.mxu0 0.0
    %59 = vmatprep.subr.mxu0 0.0
    %60 = vmatpush1.msra.mxu0 0.0
    %61 = vmatprep.subr.mxu0 0.0
    %62 = vmatpush1.msra.mxu0 0.0
    %63 = vmatprep.subr.mxu0 0.0
    %64 = vmatpush1.msra.mxu0 0.0
    %65 = vmatprep.subr.mxu0 0.0
    %66 = vmatpush1.msra.mxu0 0.0
    %67 = vmatprep.subr.mxu0 0.0
    %68 = vmatpush1.msra.mxu0 0.0
    %69 = vmatprep.subr.mxu0 0.0
    %70 = vmatpush1.msra.mxu0 0.0
    %71 = vmatprep.subr.mxu0 0.0
    %72 = vmatpush1.msra.mxu0 0.0
    %73 = vmatprep.subr.mxu0 0.0
    %74 = vmatpush1.msra.mxu0 0.0
    %75 = vmatprep.subr.mxu0 0.0
    %76 = vmatpush1.msra.mxu0 0.0
    %77 = vmatprep.subr.mxu0 0.0
    %78 = vmatpush1.msra.mxu0 0.0
    %79 = vmatprep.subr.mxu0 0.0
    %80 = vmatpush1.msra.mxu0 0.0
    %81 = vmatprep.subr.mxu0 0.0
    %82 = vmatpush1.msra.mxu0 0.0
    %83 = vmatprep.subr.mxu0 0.0
    %84 = vmatpush1.msra.mxu0 0.0
    %85 = vmatprep.subr.mxu0 0.0
    %86 = vmatpush1.msra.mxu0 0.0
    %87 = vmatprep.subr.mxu0 0.0
    %88 = vmatpush1.msra.mxu0 0.0
    %89 = vmatprep.subr.mxu0 0.0
    %90 = vmatpush1.msra.mxu0 0.0
    %91 = vmatprep.subr.mxu0 0.0
    %92 = vmatpush1.msra.mxu0 0.0
    %93 = vmatprep.subr.mxu0 0.0
    %94 = vmatpush1.msra.mxu0 0.0
    %95 = vmatprep.subr.mxu0 0.0
    %96 = vmatpush1.msra.mxu0 0.0
    %97 = vmatprep.subr.mxu0 0.0
    %98 = vmatpush1.msra.mxu0 0.0
    %99 = vmatprep.subr.mxu0 0.0
    %100 = vmatpush1.msra.mxu0 0.0
    %101 = vmatprep.subr.mxu0 0.0
    %102 = vmatpush1.msra.mxu0 0.0
    %103 = vmatprep.subr.mxu0 0.0
    %104 = vmatpush1.msra.mxu0 0.0
    %105 = vmatprep.subr.mxu0 0.0
    %106 = vmatpush1.msra.mxu0 0.0
    %107 = vmatprep.subr.mxu0 0.0
    %108 = vmatpush1.msra.mxu0 0.0
    %109 = vmatprep.subr.mxu0 0.0
    %110 = vmatpush1.msra.mxu0 0.0
    %111 = vmatprep.mubr.f32.mxu0 0.0
    %112 = vmatmul.mubr.f32.gmra.mrb[0].mxu0 %v42
    %v113 = vpop.f32.mrb[0].mxu0
    %v114 = vadd.f32 0.0, %v113
    %v115 = vpop.f32.mrb[0].mxu0
    %116 = vmatprep.mubr.f32.mxu0 0.0
    %117 = vmatmul.mubr.f32.gmra.mrb[0].mxu0 %v45
    %v118 = vpop.f32.mrb[0].mxu0
    %v119 = vadd.f32 0.0, %v118
    %v120 = vpop.f32.mrb[0].mxu0
    %121 = vdwg.mxu0
    %v122 = vmul.f32 %v114, 0.09090909
    %v123 = vmul.f32 %v119, 0.09090909
    %v124 = vadd.f32 %v32, %v122
    %v125 = vadd.f32 %v33, %v123
    %126 = vmatprep.subr.mxu0 0.0
    %127 = vmatpush1.msra.mxu0 %v124
    %128 = vmatprep.subr.mxu0 0.0
    %129 = vmatpush1.msra.mxu0 %v125
    %130 = vmatprep.subr.mxu0 0.0
    %131 = vmatpush1.msra.mxu0 0.0
    %132 = vmatprep.subr.mxu0 0.0
    %133 = vmatpush1.msra.mxu0 0.0
    %134 = vmatprep.subr.mxu0 0.0
    %135 = vmatpush1.msra.mxu0 0.0
    %136 = vmatprep.subr.mxu0 0.0
    %137 = vmatpush1.msra.mxu0 0.0
    %138 = vmatprep.subr.mxu0 0.0
    %139 = vmatpush1.msra.mxu0 0.0
    %140 = vmatprep.subr.mxu0 0.0
    %141 = vmatpush1.msra.mxu0 0.0
    %142 = vmatprep.subr.mxu0 0.0
    %143 = vmatpush1.msra.mxu0 0.0
    %144 = vmatprep.subr.mxu0 0.0
    %145 = vmatpush1.msra.mxu0 0.0
    %146 = vmatprep.subr.mxu0 0.0
    %147 = vmatpush1.msra.mxu0 0.0
    %148 = vmatprep.subr.mxu0 0.0
    %149 = vmatpush1.msra.mxu0 0.0
    %150 = vmatprep.subr.mxu0 0.0
    %151 = vmatpush1.msra.mxu0 0.0
    %152 = vmatprep.subr.mxu0 0.0
    %153 = vmatpush1.msra.mxu0 0.0
    %154 = vmatprep.subr.mxu0 0.0
    %155 = vmatpush1.msra.mxu0 0.0
    %156 = vmatprep.subr.mxu0 0.0
    %157 = vmatpush1.msra.mxu0 0.0
    %158 = vmatprep.subr.mxu0 0.0
    %159 = vmatpush1.msra.mxu0 0.0
    %160 = vmatprep.subr.mxu0 0.0
    %161 = vmatpush1.msra.mxu0 0.0
    %162 = vmatprep.subr.mxu0 0.0
    %163 = vmatpush1.msra.mxu0 0.0
    %164 = vmatprep.subr.mxu0 0.0
    %165 = vmatpush1.msra.mxu0 0.0
    %166 = vmatprep.subr.mxu0 0.0
    %167 = vmatpush1.msra.mxu0 0.0
    %168 = vmatprep.subr.mxu0 0.0
    %169 = vmatpush1.msra.mxu0 0.0
    %170 = vmatprep.subr.mxu0 0.0
    %171 = vmatpush1.msra.mxu0 0.0
    %172 = vmatprep.subr.mxu0 0.0
    %173 = vmatpush1.msra.mxu0 0.0
    %174 = vmatprep.subr.mxu0 0.0
    %175 = vmatpush1.msra.mxu0 0.0
    %176 = vmatprep.subr.mxu0 0.0
    %177 = vmatpush1.msra.mxu0 0.0
    %178 = vmatprep.subr.mxu0 0.0
    %179 = vmatpush1.msra.mxu0 0.0
    %180 = vmatprep.subr.mxu0 0.0
    %181 = vmatpush1.msra.mxu0 0.0
    %182 = vmatprep.subr.mxu0 0.0
    %183 = vmatpush1.msra.mxu0 0.0
    %184 = vmatprep.subr.mxu0 0.0
    %185 = vmatpush1.msra.mxu0 0.0
    %186 = vmatprep.subr.mxu0 0.0
    %187 = vmatpush1.msra.mxu0 0.0
    %188 = vmatprep.subr.mxu0 0.0
    %189 = vmatpush1.msra.mxu0 0.0
    %190 = vmatprep.mubr.f32.mxu0 0.0
    %191 = vmatmul.mubr.f32.gmra.mrb[0].mxu0 %v42
    %v192 = vpop.f32.mrb[0].mxu0
    %v193 = vadd.f32 0.0, %v192
    %v194 = vpop.f32.mrb[0].mxu0
    %195 = vmatprep.mubr.f32.mxu0 0.0
    %196 = vmatmul.mubr.f32.gmra.mrb[0].mxu0 %v45
    %v197 = vpop.f32.mrb[0].mxu0
    %v198 = vadd.f32 0.0, %v197
    %v199 = vpop.f32.mrb[0].mxu0
    %200 = vdwg.mxu0
    %v201 = vmul.f32 %v193, 0.1
    %v202 = vmul.f32 %v198, 0.1
    %v203 = vadd.f32 %v32, %v201
    %v204 = vadd.f32 %v33, %v202
    %205 = vmatprep.subr.mxu0 0.0
    %206 = vmatpush1.msra.mxu0 %v203
    %207 = vmatprep.subr.mxu0 0.0
    %208 = vmatpush1.msra.mxu0 %v204
    %209 = vmatprep.subr.mxu0 0.0
    %210 = vmatpush1.msra.mxu0 0.0
    %211 = vmatprep.subr.mxu0 0.0
    %212 = vmatpush1.msra.mxu0 0.0
    %213 = vmatprep.subr.mxu0 0.0
    %214 = vmatpush1.msra.mxu0 0.0
    %215 = vmatprep.subr.mxu0 0.0
    %216 = vmatpush1.msra.mxu0 0.0
    %217 = vmatprep.subr.mxu0 0.0
    %218 = vmatpush1.msra.mxu0 0.0
    %219 = vmatprep.subr.mxu0 0.0
    %220 = vmatpush1.msra.mxu0 0.0
    %221 = vmatprep.subr.mxu0 0.0
    %222 = vmatpush1.msra.mxu0 0.0
    %223 = vmatprep.subr.mxu0 0.0
    %224 = vmatpush1.msra.mxu0 0.0
    %225 = vmatprep.subr.mxu0 0.0
    %226 = vmatpush1.msra.mxu0 0.0
    %227 = vmatprep.subr.mxu0 0.0
    %228 = vmatpush1.msra.mxu0 0.0
    %229 = vmatprep.subr.mxu0 0.0
    %230 = vmatpush1.msra.mxu0 0.0
    %231 = vmatprep.subr.mxu0 0.0
    %232 = vmatpush1.msra.mxu0 0.0
    %233 = vmatprep.subr.mxu0 0.0
    %234 = vmatpush1.msra.mxu0 0.0
    %235 = vmatprep.subr.mxu0 0.0
    %236 = vmatpush1.msra.mxu0 0.0
    %237 = vmatprep.subr.mxu0 0.0
    %238 = vmatpush1.msra.mxu0 0.0
    %239 = vmatprep.subr.mxu0 0.0
    %240 = vmatpush1.msra.mxu0 0.0
    %241 = vmatprep.subr.mxu0 0.0
    %242 = vmatpush1.msra.mxu0 0.0
    %243 = vmatprep.subr.mxu0 0.0
    %244 = vmatpush1.msra.mxu0 0.0
    %245 = vmatprep.subr.mxu0 0.0
    %246 = vmatpush1.msra.mxu0 0.0
    %247 = vmatprep.subr.mxu0 0.0
    %248 = vmatpush1.msra.mxu0 0.0
    %249 = vmatprep.subr.mxu0 0.0
    %250 = vmatpush1.msra.mxu0 0.0
    %251 = vmatprep.subr.mxu0 0.0
    %252 = vmatpush1.msra.mxu0 0.0
    %253 = vmatprep.subr.mxu0 0.0
    %254 = vmatpush1.msra.mxu0 0.0
    %255 = vmatprep.subr.mxu0 0.0
    %256 = vmatpush1.msra.mxu0 0.0
    %257 = vmatprep.subr.mxu0 0.0
    %258 = vmatpush1.msra.mxu0 0.0
    %259 = vmatprep.subr.mxu0 0.0
    %260 = vmatpush1.msra.mxu0 0.0
    %261 = vmatprep.subr.mxu0 0.0
    %262 = vmatpush1.msra.mxu0 0.0
    %263 = vmatprep.subr.mxu0 0.0
    %264 = vmatpush1.msra.mxu0 0.0
    %265 = vmatprep.subr.mxu0 0.0
    %266 = vmatpush1.msra.mxu0 0.0
    %267 = vmatprep.subr.mxu0 0.0
    %268 = vmatpush1.msra.mxu0 0.0
    %269 = vmatprep.mubr.f32.mxu0 0.0
    %270 = vmatmul.mubr.f32.gmra.mrb[0].mxu0 %v42
    %v271 = vpop.f32.mrb[0].mxu0
    %v272 = vadd.f32 0.0, %v271
    %v273 = vpop.f32.mrb[0].mxu0
    %274 = vmatprep.mubr.f32.mxu0 0.0
    %275 = vmatmul.mubr.f32.gmra.mrb[0].mxu0 %v45
    %v276 = vpop.f32.mrb[0].mxu0
    %v277 = vadd.f32 0.0, %v276
    %v278 = vpop.f32.mrb[0].mxu0
    %279 = vdwg.mxu0
    %v280 = vmul.f32 %v272, 0.11111111
    %v281 = vmul.f32 %v277, 0.11111111
    %v282 = vadd.f32 %v32, %v280
    %v283 = vadd.f32 %v33, %v281
    %284 = vmatprep.subr.mxu0 0.0
    %285 = vmatpush1.msra.mxu0 %v282
    %286 = vmatprep.subr.mxu0 0.0
    %287 = vmatpush1.msra.mxu0 %v283
    %288 = vmatprep.subr.mxu0 0.0
    %289 = vmatpush1.msra.mxu0 0.0
    %290 = vmatprep.subr.mxu0 0.0
    %291 = vmatpush1.msra.mxu0 0.0
    %292 = vmatprep.subr.mxu0 0.0
    %293 = vmatpush1.msra.mxu0 0.0
    %294 = vmatprep.subr.mxu0 0.0
    %295 = vmatpush1.msra.mxu0 0.0
    %296 = vmatprep.subr.mxu0 0.0
    %297 = vmatpush1.msra.mxu0 0.0
    %298 = vmatprep.subr.mxu0 0.0
    %299 = vmatpush1.msra.mxu0 0.0
    %300 = vmatprep.subr.mxu0 0.0
    %301 = vmatpush1.msra.mxu0 0.0
    %302 = vmatprep.subr.mxu0 0.0
    %303 = vmatpush1.msra.mxu0 0.0
    %304 = vmatprep.subr.mxu0 0.0
    %305 = vmatpush1.msra.mxu0 0.0
    %306 = vmatprep.subr.mxu0 0.0
    %307 = vmatpush1.msra.mxu0 0.0
    %308 = vmatprep.subr.mxu0 0.0
    %309 = vmatpush1.msra.mxu0 0.0
    %310 = vmatprep.subr.mxu0 0.0
    %311 = vmatpush1.msra.mxu0 0.0
    %312 = vmatprep.subr.mxu0 0.0
    %313 = vmatpush1.msra.mxu0 0.0
    %314 = vmatprep.subr.mxu0 0.0
    %315 = vmatpush1.msra.mxu0 0.0
    %316 = vmatprep.subr.mxu0 0.0
    %317 = vmatpush1.msra.mxu0 0.0
    %318 = vmatprep.subr.mxu0 0.0
    %319 = vmatpush1.msra.mxu0 0.0
    %320 = vmatprep.subr.mxu0 0.0
    %321 = vmatpush1.msra.mxu0 0.0
    %322 = vmatprep.subr.mxu0 0.0
    %323 = vmatpush1.msra.mxu0 0.0
    %324 = vmatprep.subr.mxu0 0.0
    %325 = vmatpush1.msra.mxu0 0.0
    %326 = vmatprep.subr.mxu0 0.0
    %327 = vmatpush1.msra.mxu0 0.0
    %328 = vmatprep.subr.mxu0 0.0
    %329 = vmatpush1.msra.mxu0 0.0
    %330 = vmatprep.subr.mxu0 0.0
    %331 = vmatpush1.msra.mxu0 0.0
    %332 = vmatprep.subr.mxu0 0.0
    %333 = vmatpush1.msra.mxu0 0.0
    %334 = vmatprep.subr.mxu0 0.0
    %335 = vmatpush1.msra.mxu0 0.0
    %336 = vmatprep.subr.mxu0 0.0
    %337 = vmatpush1.msra.mxu0 0.0
    %338 = vmatprep.subr.mxu0 0.0
    %339 = vmatpush1.msra.mxu0 0.0
    %340 = vmatprep.subr.mxu0 0.0
    %341 = vmatpush1.msra.mxu0 0.0
    %342 = vmatprep.subr.mxu0 0.0
    %343 = vmatpush1.msra.mxu0 0.0
    %344 = vmatprep.subr.mxu0 0.0
    %345 = vmatpush1.msra.mxu0 0.0
    %346 = vmatprep.subr.mxu0 0.0
    %347 = vmatpush1.msra.mxu0 0.0
    %348 = vmatprep.mubr.f32.mxu0 0.0
    %349 = vmatmul.mubr.f32.gmra.mrb[0].mxu0 %v42
    %v350 = vpop.f32.mrb[0].mxu0
    %v351 = vadd.f32 0.0, %v350
    %v352 = vpop.f32.mrb[0].mxu0
    %353 = vmatprep.mubr.f32.mxu0 0.0
    %354 = vmatmul.mubr.f32.gmra.mrb[0].mxu0 %v45
    %v355 = vpop.f32.mrb[0].mxu0
    %v356 = vadd.f32 0.0, %v355
    %v357 = vpop.f32.mrb[0].mxu0
    %358 = vdwg.mxu0
    %v359 = vmul.f32 %v351, 0.125
    %v360 = vmul.f32 %v356, 0.125
    %v361 = vadd.f32 %v32, %v359
    %v362 = vadd.f32 %v33, %v360
    %363 = vmatprep.subr.mxu0 0.0
    %364 = vmatpush1.msra.mxu0 %v361
    %365 = vmatprep.subr.mxu0 0.0
    %366 = vmatpush1.msra.mxu0 %v362
    %367 = vmatprep.subr.mxu0 0.0
    %368 = vmatpush1.msra.mxu0 0.0
    %369 = vmatprep.subr.mxu0 0.0
    %370 = vmatpush1.msra.mxu0 0.0
    %371 = vmatprep.subr.mxu0 0.0
    %372 = vmatpush1.msra.mxu0 0.0
    %373 = vmatprep.subr.mxu0 0.0
    %374 = vmatpush1.msra.mxu0 0.0
    %375 = vmatprep.subr.mxu0 0.0
    %376 = vmatpush1.msra.mxu0 0.0
    %377 = vmatprep.subr.mxu0 0.0
    %378 = vmatpush1.msra.mxu0 0.0
    %379 = vmatprep.subr.mxu0 0.0
    %380 = vmatpush1.msra.mxu0 0.0
    %381 = vmatprep.subr.mxu0 0.0
    %382 = vmatpush1.msra.mxu0 0.0
    %383 = vmatprep.subr.mxu0 0.0
    %384 = vmatpush1.msra.mxu0 0.0
    %385 = vmatprep.subr.mxu0 0.0
    %386 = vmatpush1.msra.mxu0 0.0
    %387 = vmatprep.subr.mxu0 0.0
    %388 = vmatpush1.msra.mxu0 0.0
    %389 = vmatprep.subr.mxu0 0.0
    %390 = vmatpush1.msra.mxu0 0.0
    %391 = vmatprep.subr.mxu0 0.0
    %392 = vmatpush1.msra.mxu0 0.0
    %393 = vmatprep.subr.mxu0 0.0
    %394 = vmatpush1.msra.mxu0 0.0
    %395 = vmatprep.subr.mxu0 0.0
    %396 = vmatpush1.msra.mxu0 0.0
    %397 = vmatprep.subr.mxu0 0.0
    %398 = vmatpush1.msra.mxu0 0.0
    %399 = vmatprep.subr.mxu0 0.0
    %400 = vmatpush1.msra.mxu0 0.0
    %401 = vmatprep.subr.mxu0 0.0
    %402 = vmatpush1.msra.mxu0 0.0
    %403 = vmatprep.subr.mxu0 0.0
    %404 = vmatpush1.msra.mxu0 0.0
    %405 = vmatprep.subr.mxu0 0.0
    %406 = vmatpush1.msra.mxu0 0.0
    %407 = vmatprep.subr.mxu0 0.0
    %408 = vmatpush1.msra.mxu0 0.0
    %409 = vmatprep.subr.mxu0 0.0
    %410 = vmatpush1.msra.mxu0 0.0
    %411 = vmatprep.subr.mxu0 0.0
    %412 = vmatpush1.msra.mxu0 0.0
    %413 = vmatprep.subr.mxu0 0.0
    %414 = vmatpush1.msra.mxu0 0.0
    %415 = vmatprep.subr.mxu0 0.0
    %416 = vmatpush1.msra.mxu0 0.0
    %417 = vmatprep.subr.mxu0 0.0
    %418 = vmatpush1.msra.mxu0 0.0
    %419 = vmatprep.subr.mxu0 0.0
    %420 = vmatpush1.msra.mxu0 0.0
    %421 = vmatprep.subr.mxu0 0.0
    %422 = vmatpush1.msra.mxu0 0.0
    %423 = vmatprep.subr.mxu0 0.0
    %424 = vmatpush1.msra.mxu0 0.0
    %425 = vmatprep.subr.mxu0 0.0
    %426 = vmatpush1.msra.mxu0 0.0
    %427 = vmatprep.mubr.f32.mxu0 0.0
    %428 = vmatmul.mubr.f32.gmra.mrb[0].mxu0 %v42
    %v429 = vpop.f32.mrb[0].mxu0
    %v430 = vadd.f32 0.0, %v429
    %v431 = vpop.f32.mrb[0].mxu0
    %432 = vmatprep.mubr.f32.mxu0 0.0
    %433 = vmatmul.mubr.f32.gmra.mrb[0].mxu0 %v45
    %v434 = vpop.f32.mrb[0].mxu0
    %v435 = vadd.f32 0.0, %v434
    %v436 = vpop.f32.mrb[0].mxu0
    %437 = vdwg.mxu0
    %v438 = vmul.f32 %v430, 0.14285715
    %v439 = vmul.f32 %v435, 0.14285715
    %v440 = vadd.f32 %v32, %v438
    %v441 = vadd.f32 %v33, %v439
    %442 = vmatprep.subr.mxu0 0.0
    %443 = vmatpush1.msra.mxu0 %v440
    %444 = vmatprep.subr.mxu0 0.0
    %445 = vmatpush1.msra.mxu0 %v441
    %446 = vmatprep.subr.mxu0 0.0
    %447 = vmatpush1.msra.mxu0 0.0
    %448 = vmatprep.subr.mxu0 0.0
    %449 = vmatpush1.msra.mxu0 0.0
    %450 = vmatprep.subr.mxu0 0.0
    %451 = vmatpush1.msra.mxu0 0.0
    %452 = vmatprep.subr.mxu0 0.0
    %453 = vmatpush1.msra.mxu0 0.0
    %454 = vmatprep.subr.mxu0 0.0
    %455 = vmatpush1.msra.mxu0 0.0
    %456 = vmatprep.subr.mxu0 0.0
    %457 = vmatpush1.msra.mxu0 0.0
    %458 = vmatprep.subr.mxu0 0.0
    %459 = vmatpush1.msra.mxu0 0.0
    %460 = vmatprep.subr.mxu0 0.0
    %461 = vmatpush1.msra.mxu0 0.0
    %462 = vmatprep.subr.mxu0 0.0
    %463 = vmatpush1.msra.mxu0 0.0
    %464 = vmatprep.subr.mxu0 0.0
    %465 = vmatpush1.msra.mxu0 0.0
    %466 = vmatprep.subr.mxu0 0.0
    %467 = vmatpush1.msra.mxu0 0.0
    %468 = vmatprep.subr.mxu0 0.0
    %469 = vmatpush1.msra.mxu0 0.0
    %470 = vmatprep.subr.mxu0 0.0
    %471 = vmatpush1.msra.mxu0 0.0
    %472 = vmatprep.subr.mxu0 0.0
    %473 = vmatpush1.msra.mxu0 0.0
    %474 = vmatprep.subr.mxu0 0.0
    %475 = vmatpush1.msra.mxu0 0.0
    %476 = vmatprep.subr.mxu0 0.0
    %477 = vmatpush1.msra.mxu0 0.0
    %478 = vmatprep.subr.mxu0 0.0
    %479 = vmatpush1.msra.mxu0 0.0
    %480 = vmatprep.subr.mxu0 0.0
    %481 = vmatpush1.msra.mxu0 0.0
    %482 = vmatprep.subr.mxu0 0.0
    %483 = vmatpush1.msra.mxu0 0.0
    %484 = vmatprep.subr.mxu0 0.0
    %485 = vmatpush1.msra.mxu0 0.0
    %486 = vmatprep.subr.mxu0 0.0
    %487 = vmatpush1.msra.mxu0 0.0
    %488 = vmatprep.subr.mxu0 0.0
    %489 = vmatpush1.msra.mxu0 0.0
    %490 = vmatprep.subr.mxu0 0.0
    %491 = vmatpush1.msra.mxu0 0.0
    %492 = vmatprep.subr.mxu0 0.0
    %493 = vmatpush1.msra.mxu0 0.0
    %494 = vmatprep.subr.mxu0 0.0
    %495 = vmatpush1.msra.mxu0 0.0
    %496 = vmatprep.subr.mxu0 0.0
    %497 = vmatpush1.msra.mxu0 0.0
    %498 = vmatprep.subr.mxu0 0.0
    %499 = vmatpush1.msra.mxu0 0.0
    %500 = vmatprep.subr.mxu0 0.0
    %501 = vmatpush1.msra.mxu0 0.0
    %502 = vmatprep.subr.mxu0 0.0
    %503 = vmatpush1.msra.mxu0 0.0
    %504 = vmatprep.subr.mxu0 0.0
    %505 = vmatpush1.msra.mxu0 0.0
    %506 = vmatprep.mubr.f32.mxu0 0.0
    %507 = vmatmul.mubr.f32.gmra.mrb[0].mxu0 %v42
    %v508 = vpop.f32.mrb[0].mxu0
    %v509 = vadd.f32 0.0, %v508
    %v510 = vpop.f32.mrb[0].mxu0
    %511 = vmatprep.mubr.f32.mxu0 0.0
    %512 = vmatmul.mubr.f32.gmra.mrb[0].mxu0 %v45
    %v513 = vpop.f32.mrb[0].mxu0
    %v514 = vadd.f32 0.0, %v513
    %v515 = vpop.f32.mrb[0].mxu0
    %516 = vdwg.mxu0
    %v517 = vmul.f32 %v509, 0.16666667
    %v518 = vmul.f32 %v514, 0.16666667
    %v519 = vadd.f32 %v32, %v517
    %v520 = vadd.f32 %v33, %v518
    %521 = vmatprep.subr.mxu0 0.0
    %522 = vmatpush1.msra.mxu0 %v519
    %523 = vmatprep.subr.mxu0 0.0
    %524 = vmatpush1.msra.mxu0 %v520
    %525 = vmatprep.subr.mxu0 0.0
    %526 = vmatpush1.msra.mxu0 0.0
    %527 = vmatprep.subr.mxu0 0.0
    %528 = vmatpush1.msra.mxu0 0.0
    %529 = vmatprep.subr.mxu0 0.0
    %530 = vmatpush1.msra.mxu0 0.0
    %531 = vmatprep.subr.mxu0 0.0
    %532 = vmatpush1.msra.mxu0 0.0
    %533 = vmatprep.subr.mxu0 0.0
    %534 = vmatpush1.msra.mxu0 0.0
    %535 = vmatprep.subr.mxu0 0.0
    %536 = vmatpush1.msra.mxu0 0.0
    %537 = vmatprep.subr.mxu0 0.0
    %538 = vmatpush1.msra.mxu0 0.0
    %539 = vmatprep.subr.mxu0 0.0
    %540 = vmatpush1.msra.mxu0 0.0
    %541 = vmatprep.subr.mxu0 0.0
    %542 = vmatpush1.msra.mxu0 0.0
    %543 = vmatprep.subr.mxu0 0.0
    %544 = vmatpush1.msra.mxu0 0.0
    %545 = vmatprep.subr.mxu0 0.0
    %546 = vmatpush1.msra.mxu0 0.0
    %547 = vmatprep.subr.mxu0 0.0
    %548 = vmatpush1.msra.mxu0 0.0
    %549 = vmatprep.subr.mxu0 0.0
    %550 = vmatpush1.msra.mxu0 0.0
    %551 = vmatprep.subr.mxu0 0.0
    %552 = vmatpush1.msra.mxu0 0.0
    %553 = vmatprep.subr.mxu0 0.0
    %554 = vmatpush1.msra.mxu0 0.0
    %555 = vmatprep.subr.mxu0 0.0
    %556 = vmatpush1.msra.mxu0 0.0
    %557 = vmatprep.subr.mxu0 0.0
    %558 = vmatpush1.msra.mxu0 0.0
    %559 = vmatprep.subr.mxu0 0.0
    %560 = vmatpush1.msra.mxu0 0.0
    %561 = vmatprep.subr.mxu0 0.0
    %562 = vmatpush1.msra.mxu0 0.0
    %563 = vmatprep.subr.mxu0 0.0
    %564 = vmatpush1.msra.mxu0 0.0
    %565 = vmatprep.subr.mxu0 0.0
    %566 = vmatpush1.msra.mxu0 0.0
    %567 = vmatprep.subr.mxu0 0.0
    %568 = vmatpush1.msra.mxu0 0.0
    %569 = vmatprep.subr.mxu0 0.0
    %570 = vmatpush1.msra.mxu0 0.0
    %571 = vmatprep.subr.mxu0 0.0
    %572 = vmatpush1.msra.mxu0 0.0
    %573 = vmatprep.subr.mxu0 0.0
    %574 = vmatpush1.msra.mxu0 0.0
    %575 = vmatprep.subr.mxu0 0.0
    %576 = vmatpush1.msra.mxu0 0.0
    %577 = vmatprep.subr.mxu0 0.0
    %578 = vmatpush1.msra.mxu0 0.0
    %579 = vmatprep.subr.mxu0 0.0
    %580 = vmatpush1.msra.mxu0 0.0
    %581 = vmatprep.subr.mxu0 0.0
    %582 = vmatpush1.msra.mxu0 0.0
    %583 = vmatprep.subr.mxu0 0.0
    %584 = vmatpush1.msra.mxu0 0.0
    %585 = vmatprep.mubr.f32.mxu0 0.0
    %586 = vmatmul.mubr.f32.gmra.mrb[0].mxu0 %v42
    %v587 = vpop.f32.mrb[0].mxu0
    %v588 = vadd.f32 0.0, %v587
    %v589 = vpop.f32.mrb[0].mxu0
    %590 = vmatprep.mubr.f32.mxu0 0.0
    %591 = vmatmul.mubr.f32.gmra.mrb[0].mxu0 %v45
    %v592 = vpop.f32.mrb[0].mxu0
    %v593 = vadd.f32 0.0, %v592
    %v594 = vpop.f32.mrb[0].mxu0
    %595 = vdwg.mxu0
    %v596 = vmul.f32 %v588, 0.2
    %v597 = vmul.f32 %v593, 0.2
    %v598 = vadd.f32 %v32, %v596
    %v599 = vadd.f32 %v33, %v597
    %600 = vmatprep.subr.mxu0 0.0
    %601 = vmatpush1.msra.mxu0 %v598
    %602 = vmatprep.subr.mxu0 0.0
    %603 = vmatpush1.msra.mxu0 %v599
    %604 = vmatprep.subr.mxu0 0.0
    %605 = vmatpush1.msra.mxu0 0.0
    %606 = vmatprep.subr.mxu0 0.0
    %607 = vmatpush1.msra.mxu0 0.0
    %608 = vmatprep.subr.mxu0 0.0
    %609 = vmatpush1.msra.mxu0 0.0
    %610 = vmatprep.subr.mxu0 0.0
    %611 = vmatpush1.msra.mxu0 0.0
    %612 = vmatprep.subr.mxu0 0.0
    %613 = vmatpush1.msra.mxu0 0.0
    %614 = vmatprep.subr.mxu0 0.0
    %615 = vmatpush1.msra.mxu0 0.0
    %616 = vmatprep.subr.mxu0 0.0
    %617 = vmatpush1.msra.mxu0 0.0
    %618 = vmatprep.subr.mxu0 0.0
    %619 = vmatpush1.msra.mxu0 0.0
    %620 = vmatprep.subr.mxu0 0.0
    %621 = vmatpush1.msra.mxu0 0.0
    %622 = vmatprep.subr.mxu0 0.0
    %623 = vmatpush1.msra.mxu0 0.0
    %624 = vmatprep.subr.mxu0 0.0
    %625 = vmatpush1.msra.mxu0 0.0
    %626 = vmatprep.subr.mxu0 0.0
    %627 = vmatpush1.msra.mxu0 0.0
    %628 = vmatprep.subr.mxu0 0.0
    %629 = vmatpush1.msra.mxu0 0.0
    %630 = vmatprep.subr.mxu0 0.0
    %631 = vmatpush1.msra.mxu0 0.0
    %632 = vmatprep.subr.mxu0 0.0
    %633 = vmatpush1.msra.mxu0 0.0
    %634 = vmatprep.subr.mxu0 0.0
    %635 = vmatpush1.msra.mxu0 0.0
    %636 = vmatprep.subr.mxu0 0.0
    %637 = vmatpush1.msra.mxu0 0.0
    %638 = vmatprep.subr.mxu0 0.0
    %639 = vmatpush1.msra.mxu0 0.0
    %640 = vmatprep.subr.mxu0 0.0
    %641 = vmatpush1.msra.mxu0 0.0
    %642 = vmatprep.subr.mxu0 0.0
    %643 = vmatpush1.msra.mxu0 0.0
    %644 = vmatprep.subr.mxu0 0.0
    %645 = vmatpush1.msra.mxu0 0.0
    %646 = vmatprep.subr.mxu0 0.0
    %647 = vmatpush1.msra.mxu0 0.0
    %648 = vmatprep.subr.mxu0 0.0
    %649 = vmatpush1.msra.mxu0 0.0
    %650 = vmatprep.subr.mxu0 0.0
    %651 = vmatpush1.msra.mxu0 0.0
    %652 = vmatprep.subr.mxu0 0.0
    %653 = vmatpush1.msra.mxu0 0.0
    %654 = vmatprep.subr.mxu0 0.0
    %655 = vmatpush1.msra.mxu0 0.0
    %656 = vmatprep.subr.mxu0 0.0
    %657 = vmatpush1.msra.mxu0 0.0
    %658 = vmatprep.subr.mxu0 0.0
    %659 = vmatpush1.msra.mxu0 0.0
    %660 = vmatprep.subr.mxu0 0.0
    %661 = vmatpush1.msra.mxu0 0.0
    %662 = vmatprep.subr.mxu0 0.0
    %663 = vmatpush1.msra.mxu0 0.0
    %664 = vmatprep.mubr.f32.mxu0 0.0
    %665 = vmatmul.mubr.f32.gmra.mrb[0].mxu0 %v42
    %v666 = vpop.f32.mrb[0].mxu0
    %v667 = vadd.f32 0.0, %v666
    %v668 = vpop.f32.mrb[0].mxu0
    %669 = vmatprep.mubr.f32.mxu0 0.0
    %670 = vmatmul.mubr.f32.gmra.mrb[0].mxu0 %v45
    %v671 = vpop.f32.mrb[0].mxu0
    %v672 = vadd.f32 0.0, %v671
    %v673 = vpop.f32.mrb[0].mxu0
    %674 = vdwg.mxu0
    %v675 = vmul.f32 %v667, 0.25
    %v676 = vmul.f32 %v672, 0.25
    %v677 = vadd.f32 %v32, %v675
    %v678 = vadd.f32 %v33, %v676
    %679 = vmatprep.subr.mxu0 0.0
    %680 = vmatpush1.msra.mxu0 %v677
    %681 = vmatprep.subr.mxu0 0.0
    %682 = vmatpush1.msra.mxu0 %v678
    %683 = vmatprep.subr.mxu0 0.0
    %684 = vmatpush1.msra.mxu0 0.0
    %685 = vmatprep.subr.mxu0 0.0
    %686 = vmatpush1.msra.mxu0 0.0
    %687 = vmatprep.subr.mxu0 0.0
    %688 = vmatpush1.msra.mxu0 0.0
    %689 = vmatprep.subr.mxu0 0.0
    %690 = vmatpush1.msra.mxu0 0.0
    %691 = vmatprep.subr.mxu0 0.0
    %692 = vmatpush1.msra.mxu0 0.0
    %693 = vmatprep.subr.mxu0 0.0
    %694 = vmatpush1.msra.mxu0 0.0
    %695 = vmatprep.subr.mxu0 0.0
    %696 = vmatpush1.msra.mxu0 0.0
    %697 = vmatprep.subr.mxu0 0.0
    %698 = vmatpush1.msra.mxu0 0.0
    %699 = vmatprep.subr.mxu0 0.0
    %700 = vmatpush1.msra.mxu0 0.0
    %701 = vmatprep.subr.mxu0 0.0
    %702 = vmatpush1.msra.mxu0 0.0
    %703 = vmatprep.subr.mxu0 0.0
    %704 = vmatpush1.msra.mxu0 0.0
    %705 = vmatprep.subr.mxu0 0.0
    %706 = vmatpush1.msra.mxu0 0.0
    %707 = vmatprep.subr.mxu0 0.0
    %708 = vmatpush1.msra.mxu0 0.0
    %709 = vmatprep.subr.mxu0 0.0
    %710 = vmatpush1.msra.mxu0 0.0
    %711 = vmatprep.subr.mxu0 0.0
    %712 = vmatpush1.msra.mxu0 0.0
    %713 = vmatprep.subr.mxu0 0.0
    %714 = vmatpush1.msra.mxu0 0.0
    %715 = vmatprep.subr.mxu0 0.0
    %716 = vmatpush1.msra.mxu0 0.0
    %717 = vmatprep.subr.mxu0 0.0
    %718 = vmatpush1.msra.mxu0 0.0
    %719 = vmatprep.subr.mxu0 0.0
    %720 = vmatpush1.msra.mxu0 0.0
    %721 = vmatprep.subr.mxu0 0.0
    %722 = vmatpush1.msra.mxu0 0.0
    %723 = vmatprep.subr.mxu0 0.0
    %724 = vmatpush1.msra.mxu0 0.0
    %725 = vmatprep.subr.mxu0 0.0
    %726 = vmatpush1.msra.mxu0 0.0
    %727 = vmatprep.subr.mxu0 0.0
    %728 = vmatpush1.msra.mxu0 0.0
    %729 = vmatprep.subr.mxu0 0.0
    %730 = vmatpush1.msra.mxu0 0.0
    %731 = vmatprep.subr.mxu0 0.0
    %732 = vmatpush1.msra.mxu0 0.0
    %733 = vmatprep.subr.mxu0 0.0
    %734 = vmatpush1.msra.mxu0 0.0
    %735 = vmatprep.subr.mxu0 0.0
    %736 = vmatpush1.msra.mxu0 0.0
    %737 = vmatprep.subr.mxu0 0.0
    %738 = vmatpush1.msra.mxu0 0.0
    %739 = vmatprep.subr.mxu0 0.0
    %740 = vmatpush1.msra.mxu0 0.0
    %741 = vmatprep.subr.mxu0 0.0
    %742 = vmatpush1.msra.mxu0 0.0
    %743 = vmatprep.mubr.f32.mxu0 0.0
    %744 = vmatmul.mubr.f32.gmra.mrb[0].mxu0 %v42
    %v745 = vpop.f32.mrb[0].mxu0
    %v746 = vadd.f32 0.0, %v745
    %v747 = vpop.f32.mrb[0].mxu0
    %748 = vmatprep.mubr.f32.mxu0 0.0
    %749 = vmatmul.mubr.f32.gmra.mrb[0].mxu0 %v45
    %v750 = vpop.f32.mrb[0].mxu0
    %v751 = vadd.f32 0.0, %v750
    %v752 = vpop.f32.mrb[0].mxu0
    %753 = vdwg.mxu0
    %v754 = vmul.f32 %v746, 0.33333334
    %v755 = vmul.f32 %v751, 0.33333334
    %v756 = vadd.f32 %v32, %v754
    %v757 = vadd.f32 %v33, %v755
    %758 = vmatprep.subr.mxu0 0.0
    %759 = vmatpush1.msra.mxu0 %v756
    %760 = vmatprep.subr.mxu0 0.0
    %761 = vmatpush1.msra.mxu0 %v757
    %762 = vmatprep.subr.mxu0 0.0
    %763 = vmatpush1.msra.mxu0 0.0
    %764 = vmatprep.subr.mxu0 0.0
    %765 = vmatpush1.msra.mxu0 0.0
    %766 = vmatprep.subr.mxu0 0.0
    %767 = vmatpush1.msra.mxu0 0.0
    %768 = vmatprep.subr.mxu0 0.0
    %769 = vmatpush1.msra.mxu0 0.0
    %770 = vmatprep.subr.mxu0 0.0
    %771 = vmatpush1.msra.mxu0 0.0
    %772 = vmatprep.subr.mxu0 0.0
    %773 = vmatpush1.msra.mxu0 0.0
    %774 = vmatprep.subr.mxu0 0.0
    %775 = vmatpush1.msra.mxu0 0.0
    %776 = vmatprep.subr.mxu0 0.0
    %777 = vmatpush1.msra.mxu0 0.0
    %778 = vmatprep.subr.mxu0 0.0
    %779 = vmatpush1.msra.mxu0 0.0
    %780 = vmatprep.subr.mxu0 0.0
    %781 = vmatpush1.msra.mxu0 0.0
    %782 = vmatprep.subr.mxu0 0.0
    %783 = vmatpush1.msra.mxu0 0.0
    %784 = vmatprep.subr.mxu0 0.0
    %785 = vmatpush1.msra.mxu0 0.0
    %786 = vmatprep.subr.mxu0 0.0
    %787 = vmatpush1.msra.mxu0 0.0
    %788 = vmatprep.subr.mxu0 0.0
    %789 = vmatpush1.msra.mxu0 0.0
    %790 = vmatprep.subr.mxu0 0.0
    %791 = vmatpush1.msra.mxu0 0.0
    %792 = vmatprep.subr.mxu0 0.0
    %793 = vmatpush1.msra.mxu0 0.0
    %794 = vmatprep.subr.mxu0 0.0
    %795 = vmatpush1.msra.mxu0 0.0
    %796 = vmatprep.subr.mxu0 0.0
    %797 = vmatpush1.msra.mxu0 0.0
    %798 = vmatprep.subr.mxu0 0.0
    %799 = vmatpush1.msra.mxu0 0.0
    %800 = vmatprep.subr.mxu0 0.0
    %801 = vmatpush1.msra.mxu0 0.0
    %802 = vmatprep.subr.mxu0 0.0
    %803 = vmatpush1.msra.mxu0 0.0
    %804 = vmatprep.subr.mxu0 0.0
    %805 = vmatpush1.msra.mxu0 0.0
    %806 = vmatprep.subr.mxu0 0.0
    %807 = vmatpush1.msra.mxu0 0.0
    %808 = vmatprep.subr.mxu0 0.0
    %809 = vmatpush1.msra.mxu0 0.0
    %810 = vmatprep.subr.mxu0 0.0
    %811 = vmatpush1.msra.mxu0 0.0
    %812 = vmatprep.subr.mxu0 0.0
    %813 = vmatpush1.msra.mxu0 0.0
    %814 = vmatprep.subr.mxu0 0.0
    %815 = vmatpush1.msra.mxu0 0.0
    %816 = vmatprep.subr.mxu0 0.0
    %817 = vmatpush1.msra.mxu0 0.0
    %818 = vmatprep.subr.mxu0 0.0
    %819 = vmatpush1.msra.mxu0 0.0
    %820 = vmatprep.subr.mxu0 0.0
    %821 = vmatpush1.msra.mxu0 0.0
    %822 = vmatprep.mubr.f32.mxu0 0.0
    %823 = vmatmul.mubr.f32.gmra.mrb[0].mxu0 %v42
    %v824 = vpop.f32.mrb[0].mxu0
    %v825 = vadd.f32 0.0, %v824
    %v826 = vpop.f32.mrb[0].mxu0
    %827 = vmatprep.mubr.f32.mxu0 0.0
    %828 = vmatmul.mubr.f32.gmra.mrb[0].mxu0 %v45
    %v829 = vpop.f32.mrb[0].mxu0
    %v830 = vadd.f32 0.0, %v829
    %v831 = vpop.f32.mrb[0].mxu0
    %832 = vdwg.mxu0
    %v833 = vmul.f32 %v825, 0.5
    %v834 = vmul.f32 %v830, 0.5
    %v835 = vadd.f32 %v32, %v833
    %v836 = vadd.f32 %v33, %v834
    %837 = vmatprep.subr.mxu0 0.0
    %838 = vmatpush1.msra.mxu0 %v835
    %839 = vmatprep.subr.mxu0 0.0
    %840 = vmatpush1.msra.mxu0 %v836
    %841 = vmatprep.subr.mxu0 0.0
    %842 = vmatpush1.msra.mxu0 0.0
    %843 = vmatprep.subr.mxu0 0.0
    %844 = vmatpush1.msra.mxu0 0.0
    %845 = vmatprep.subr.mxu0 0.0
    %846 = vmatpush1.msra.mxu0 0.0
    %847 = vmatprep.subr.mxu0 0.0
    %848 = vmatpush1.msra.mxu0 0.0
    %849 = vmatprep.subr.mxu0 0.0
    %850 = vmatpush1.msra.mxu0 0.0
    %851 = vmatprep.subr.mxu0 0.0
    %852 = vmatpush1.msra.mxu0 0.0
    %853 = vmatprep.subr.mxu0 0.0
    %854 = vmatpush1.msra.mxu0 0.0
    %855 = vmatprep.subr.mxu0 0.0
    %856 = vmatpush1.msra.mxu0 0.0
    %857 = vmatprep.subr.mxu0 0.0
    %858 = vmatpush1.msra.mxu0 0.0
    %859 = vmatprep.subr.mxu0 0.0
    %860 = vmatpush1.msra.mxu0 0.0
    %861 = vmatprep.subr.mxu0 0.0
    %862 = vmatpush1.msra.mxu0 0.0
    %863 = vmatprep.subr.mxu0 0.0
    %864 = vmatpush1.msra.mxu0 0.0
    %865 = vmatprep.subr.mxu0 0.0
    %866 = vmatpush1.msra.mxu0 0.0
    %867 = vmatprep.subr.mxu0 0.0
    %868 = vmatpush1.msra.mxu0 0.0
    %869 = vmatprep.subr.mxu0 0.0
    %870 = vmatpush1.msra.mxu0 0.0
    %871 = vmatprep.subr.mxu0 0.0
    %872 = vmatpush1.msra.mxu0 0.0
    %873 = vmatprep.subr.mxu0 0.0
    %874 = vmatpush1.msra.mxu0 0.0
    %875 = vmatprep.subr.mxu0 0.0
    %876 = vmatpush1.msra.mxu0 0.0
    %877 = vmatprep.subr.mxu0 0.0
    %878 = vmatpush1.msra.mxu0 0.0
    %879 = vmatprep.subr.mxu0 0.0
    %880 = vmatpush1.msra.mxu0 0.0
    %881 = vmatprep.subr.mxu0 0.0
    %882 = vmatpush1.msra.mxu0 0.0
    %883 = vmatprep.subr.mxu0 0.0
    %884 = vmatpush1.msra.mxu0 0.0
    %885 = vmatprep.subr.mxu0 0.0
    %886 = vmatpush1.msra.mxu0 0.0
    %887 = vmatprep.subr.mxu0 0.0
    %888 = vmatpush1.msra.mxu0 0.0
    %889 = vmatprep.subr.mxu0 0.0
    %890 = vmatpush1.msra.mxu0 0.0
    %891 = vmatprep.subr.mxu0 0.0
    %892 = vmatpush1.msra.mxu0 0.0
    %893 = vmatprep.subr.mxu0 0.0
    %894 = vmatpush1.msra.mxu0 0.0
    %895 = vmatprep.subr.mxu0 0.0
    %896 = vmatpush1.msra.mxu0 0.0
    %897 = vmatprep.subr.mxu0 0.0
    %898 = vmatpush1.msra.mxu0 0.0
    %899 = vmatprep.subr.mxu0 0.0
    %900 = vmatpush1.msra.mxu0 0.0
    %901 = vmatprep.mubr.f32.mxu0 0.0
    %902 = vmatmul.mubr.f32.gmra.mrb[0].mxu0 %v42
    %v903 = vpop.f32.mrb[0].mxu0
    %v904 = vadd.f32 0.0, %v903
    %v905 = vpop.f32.mrb[0].mxu0
    %906 = vmatprep.mubr.f32.mxu0 0.0
    %907 = vmatmul.mubr.f32.gmra.mrb[0].mxu0 %v45
    %v908 = vpop.f32.mrb[0].mxu0
    %v909 = vadd.f32 0.0, %v908
    %v910 = vpop.f32.mrb[0].mxu0
    %911 = vdwg.mxu0
    %v912 = vadd.f32 %v32, %v904
    %v913 = vadd.f32 %v33, %v909
    %v915 = vsel %vm40, %v912, 0
    %v918 = vsel %vm40, %v913, 0
    %920 = vmatprep.subr.mxu0 0.0
    %921 = vmatpush1.msra.mxu0 %v912
    %922 = vmatprep.subr.mxu0 0.0
    %923 = vmatpush1.msra.mxu0 %v913
    %924 = vmatprep.subr.mxu0 0.0
    %925 = vmatpush1.msra.mxu0 0.0
    %926 = vmatprep.subr.mxu0 0.0
    %927 = vmatpush1.msra.mxu0 0.0
    %928 = vmatprep.subr.mxu0 0.0
    %929 = vmatpush1.msra.mxu0 0.0
    %930 = vmatprep.subr.mxu0 0.0
    %931 = vmatpush1.msra.mxu0 0.0
    %932 = vmatprep.subr.mxu0 0.0
    %933 = vmatpush1.msra.mxu0 0.0
    %934 = vmatprep.subr.mxu0 0.0
    %935 = vmatpush1.msra.mxu0 0.0
    %936 = vmatprep.subr.mxu0 0.0
    %937 = vmatpush1.msra.mxu0 0.0
    %938 = vmatprep.subr.mxu0 0.0
    %939 = vmatpush1.msra.mxu0 0.0
    %940 = vmatprep.subr.mxu0 0.0
    %941 = vmatpush1.msra.mxu0 0.0
    %942 = vmatprep.subr.mxu0 0.0
    %943 = vmatpush1.msra.mxu0 0.0
    %944 = vmatprep.subr.mxu0 0.0
    %945 = vmatpush1.msra.mxu0 0.0
    %946 = vmatprep.subr.mxu0 0.0
    %947 = vmatpush1.msra.mxu0 0.0
    %948 = vmatprep.subr.mxu0 0.0
    %949 = vmatpush1.msra.mxu0 0.0
    %950 = vmatprep.subr.mxu0 0.0
    %951 = vmatpush1.msra.mxu0 0.0
    %952 = vmatprep.subr.mxu0 0.0
    %953 = vmatpush1.msra.mxu0 0.0
    %954 = vmatprep.subr.mxu0 0.0
    %955 = vmatpush1.msra.mxu0 0.0
    %956 = vmatprep.subr.mxu0 0.0
    %957 = vmatpush1.msra.mxu0 0.0
    %958 = vmatprep.subr.mxu0 0.0
    %959 = vmatpush1.msra.mxu0 0.0
    %960 = vmatprep.subr.mxu0 0.0
    %961 = vmatpush1.msra.mxu0 0.0
    %962 = vmatprep.subr.mxu0 0.0
    %963 = vmatpush1.msra.mxu0 0.0
    %964 = vmatprep.subr.mxu0 0.0
    %965 = vmatpush1.msra.mxu0 0.0
    %966 = vmatprep.subr.mxu0 0.0
    %967 = vmatpush1.msra.mxu0 0.0
    %968 = vmatprep.subr.mxu0 0.0
    %969 = vmatpush1.msra.mxu0 0.0
    %970 = vmatprep.subr.mxu0 0.0
    %971 = vmatpush1.msra.mxu0 0.0
    %972 = vmatprep.subr.mxu0 0.0
    %973 = vmatpush1.msra.mxu0 0.0
    %974 = vmatprep.subr.mxu0 0.0
    %975 = vmatpush1.msra.mxu0 0.0
    %976 = vmatprep.subr.mxu0 0.0
    %977 = vmatpush1.msra.mxu0 0.0
    %978 = vmatprep.subr.mxu0 0.0
    %979 = vmatpush1.msra.mxu0 0.0
    %980 = vmatprep.subr.mxu0 0.0
    %981 = vmatpush1.msra.mxu0 0.0
    %982 = vmatprep.subr.mxu0 0.0
    %983 = vmatpush1.msra.mxu0 0.0
    %984 = vmatprep.mubr.f32.mxu0 0.0
    %985 = vmatmul.mubr.f32.gmra.mrb[0].mxu0 %v915
    %v986 = vpop.f32.mrb[0].mxu0
    %v987 = vadd.f32 0.0, %v986
    %v988 = vpop.f32.mrb[0].mxu0
    %989 = vmatprep.mubr.f32.mxu0 0.0
    %990 = vmatmul.mubr.f32.gmra.mrb[0].mxu0 %v918
    %v991 = vpop.f32.mrb[0].mxu0
    %v992 = vadd.f32 0.0, %v991
    %v993 = vpop.f32.mrb[0].mxu0
    %994 = vdwg.mxu0
    %v996 = vsel %vm40, %v987, 0
    %v999 = vsel %vm40, %v992, 0
    %1001 = vmatprep.subr.mxu0 0.0
    %1002 = vmatpush1.msra.mxu0 %v987
    %1003 = vmatprep.subr.mxu0 0.0
    %1004 = vmatpush1.msra.mxu0 %v992
    %1005 = vmatprep.subr.mxu0 0.0
    %1006 = vmatpush1.msra.mxu0 0.0
    %1007 = vmatprep.subr.mxu0 0.0
    %1008 = vmatpush1.msra.mxu0 0.0
    %1009 = vmatprep.subr.mxu0 0.0
    %1010 = vmatpush1.msra.mxu0 0.0
    %1011 = vmatprep.subr.mxu0 0.0
    %1012 = vmatpush1.msra.mxu0 0.0
    %1013 = vmatprep.subr.mxu0 0.0
    %1014 = vmatpush1.msra.mxu0 0.0
    %1015 = vmatprep.subr.mxu0 0.0
    %1016 = vmatpush1.msra.mxu0 0.0
    %1017 = vmatprep.subr.mxu0 0.0
    %1018 = vmatpush1.msra.mxu0 0.0
    %1019 = vmatprep.subr.mxu0 0.0
    %1020 = vmatpush1.msra.mxu0 0.0
    %1021 = vmatprep.subr.mxu0 0.0
    %1022 = vmatpush1.msra.mxu0 0.0
    %1023 = vmatprep.subr.mxu0 0.0
    %1024 = vmatpush1.msra.mxu0 0.0
    %1025 = vmatprep.subr.mxu0 0.0
    %1026 = vmatpush1.msra.mxu0 0.0
    %1027 = vmatprep.subr.mxu0 0.0
    %1028 = vmatpush1.msra.mxu0 0.0
    %1029 = vmatprep.subr.mxu0 0.0
    %1030 = vmatpush1.msra.mxu0 0.0
    %1031 = vmatprep.subr.mxu0 0.0
    %1032 = vmatpush1.msra.mxu0 0.0
    %1033 = vmatprep.subr.mxu0 0.0
    %1034 = vmatpush1.msra.mxu0 0.0
    %1035 = vmatprep.subr.mxu0 0.0
    %1036 = vmatpush1.msra.mxu0 0.0
    %1037 = vmatprep.subr.mxu0 0.0
    %1038 = vmatpush1.msra.mxu0 0.0
    %1039 = vmatprep.subr.mxu0 0.0
    %1040 = vmatpush1.msra.mxu0 0.0
    %1041 = vmatprep.subr.mxu0 0.0
    %1042 = vmatpush1.msra.mxu0 0.0
    %1043 = vmatprep.subr.mxu0 0.0
    %1044 = vmatpush1.msra.mxu0 0.0
    %1045 = vmatprep.subr.mxu0 0.0
    %1046 = vmatpush1.msra.mxu0 0.0
    %1047 = vmatprep.subr.mxu0 0.0
    %1048 = vmatpush1.msra.mxu0 0.0
    %1049 = vmatprep.subr.mxu0 0.0
    %1050 = vmatpush1.msra.mxu0 0.0
    %1051 = vmatprep.subr.mxu0 0.0
    %1052 = vmatpush1.msra.mxu0 0.0
    %1053 = vmatprep.subr.mxu0 0.0
    %1054 = vmatpush1.msra.mxu0 0.0
    %1055 = vmatprep.subr.mxu0 0.0
    %1056 = vmatpush1.msra.mxu0 0.0
    %1057 = vmatprep.subr.mxu0 0.0
    %1058 = vmatpush1.msra.mxu0 0.0
    %1059 = vmatprep.subr.mxu0 0.0
    %1060 = vmatpush1.msra.mxu0 0.0
    %1061 = vmatprep.subr.mxu0 0.0
    %1062 = vmatpush1.msra.mxu0 0.0
    %1063 = vmatprep.subr.mxu0 0.0
    %1064 = vmatpush1.msra.mxu0 0.0
    %1065 = vmatprep.mubr.f32.mxu0 0.0
    %1066 = vmatmul.mubr.f32.gmra.mrb[0].mxu0 %v996
    %v1067 = vpop.f32.mrb[0].mxu0
    %v1068 = vadd.f32 0.0, %v1067
    %v1069 = vpop.f32.mrb[0].mxu0
    %1070 = vmatprep.mubr.f32.mxu0 0.0
    %1071 = vmatmul.mubr.f32.gmra.mrb[0].mxu0 %v999
    %v1072 = vpop.f32.mrb[0].mxu0
    %v1073 = vadd.f32 0.0, %v1072
    %v1074 = vpop.f32.mrb[0].mxu0
    %1075 = vdwg.mxu0
    %1076 = vst.msk [vmem:[#allocation5] sm:$0xff] %vm40, %v1068
    %1077 = vst.msk [vmem:[#allocation5 + $0x8] sm:$0xff] %vm40, %v1073
    %s1078 = scalar_lea.vmem [#allocation2], 16
    %v1079 = vld [vmem:[%s1078] sm:$0xff]
    %v1080 = vld [vmem:[%s1078 + $0x8] sm:$0xff]
    %v1081 = vmul.f32 %v1079, 0.083333336
    %v1082 = vmul.f32 %v1080, 0.083333336
    %v1083 = vadd.f32 %v32, %v1081
    %v1084 = vadd.f32 %v33, %v1082
    %v1086 = vsel %vm40, %v1079, 0
    %v1089 = vsel %vm40, %v1080, 0
    %1091 = vmatprep.subr.mxu0 0.0
    %1092 = vmatpush1.msra.mxu0 %v1083
    %1093 = vmatprep.subr.mxu0 0.0
    %1094 = vmatpush1.msra.mxu0 %v1084
    %1095 = vmatprep.subr.mxu0 0.0
    %1096 = vmatpush1.msra.mxu0 0.0
    %1097 = vmatprep.subr.mxu0 0.0
    %1098 = vmatpush1.msra.mxu0 0.0
    %1099 = vmatprep.subr.mxu0 0.0
    %1100 = vmatpush1.msra.mxu0 0.0
    %1101 = vmatprep.subr.mxu0 0.0
    %1102 = vmatpush1.msra.mxu0 0.0
    %1103 = vmatprep.subr.mxu0 0.0
    %1104 = vmatpush1.msra.mxu0 0.0
    %1105 = vmatprep.subr.mxu0 0.0
    %1106 = vmatpush1.msra.mxu0 0.0
    %1107 = vmatprep.subr.mxu0 0.0
    %1108 = vmatpush1.msra.mxu0 0.0
    %1109 = vmatprep.subr.mxu0 0.0
    %1110 = vmatpush1.msra.mxu0 0.0
    %1111 = vmatprep.subr.mxu0 0.0
    %1112 = vmatpush1.msra.mxu0 0.0
    %1113 = vmatprep.subr.mxu0 0.0
    %1114 = vmatpush1.msra.mxu0 0.0
    %1115 = vmatprep.subr.mxu0 0.0
    %1116 = vmatpush1.msra.mxu0 0.0
    %1117 = vmatprep.subr.mxu0 0.0
    %1118 = vmatpush1.msra.mxu0 0.0
    %1119 = vmatprep.subr.mxu0 0.0
    %1120 = vmatpush1.msra.mxu0 0.0
    %1121 = vmatprep.subr.mxu0 0.0
    %1122 = vmatpush1.msra.mxu0 0.0
    %1123 = vmatprep.subr.mxu0 0.0
    %1124 = vmatpush1.msra.mxu0 0.0
    %1125 = vmatprep.subr.mxu0 0.0
    %1126 = vmatpush1.msra.mxu0 0.0
    %1127 = vmatprep.subr.mxu0 0.0
    %1128 = vmatpush1.msra.mxu0 0.0
    %1129 = vmatprep.subr.mxu0 0.0
    %1130 = vmatpush1.msra.mxu0 0.0
    %1131 = vmatprep.subr.mxu0 0.0
    %1132 = vmatpush1.msra.mxu0 0.0
    %1133 = vmatprep.subr.mxu0 0.0
    %1134 = vmatpush1.msra.mxu0 0.0
    %1135 = vmatprep.subr.mxu0 0.0
    %1136 = vmatpush1.msra.mxu0 0.0
    %1137 = vmatprep.subr.mxu0 0.0
    %1138 = vmatpush1.msra.mxu0 0.0
    %1139 = vmatprep.subr.mxu0 0.0
    %1140 = vmatpush1.msra.mxu0 0.0
    %1141 = vmatprep.subr.mxu0 0.0
    %1142 = vmatpush1.msra.mxu0 0.0
    %1143 = vmatprep.subr.mxu0 0.0
    %1144 = vmatpush1.msra.mxu0 0.0
    %1145 = vmatprep.subr.mxu0 0.0
    %1146 = vmatpush1.msra.mxu0 0.0
    %1147 = vmatprep.subr.mxu0 0.0
    %1148 = vmatpush1.msra.mxu0 0.0
    %1149 = vmatprep.subr.mxu0 0.0
    %1150 = vmatpush1.msra.mxu0 0.0
    %1151 = vmatprep.subr.mxu0 0.0
    %1152 = vmatpush1.msra.mxu0 0.0
    %1153 = vmatprep.subr.mxu0 0.0
    %1154 = vmatpush1.msra.mxu0 0.0
    %1155 = vmatprep.mubr.f32.mxu0 0.0
    %1156 = vmatmul.mubr.f32.gmra.mrb[0].mxu0 %v1086
    %v1157 = vpop.f32.mrb[0].mxu0
    %v1158 = vadd.f32 0.0, %v1157
    %v1159 = vpop.f32.mrb[0].mxu0
    %1160 = vmatprep.mubr.f32.mxu0 0.0
    %1161 = vmatmul.mubr.f32.gmra.mrb[0].mxu0 %v1089
    %v1162 = vpop.f32.mrb[0].mxu0
    %v1163 = vadd.f32 0.0, %v1162
    %v1164 = vpop.f32.mrb[0].mxu0
    %1165 = vdwg.mxu0
    %v1166 = vmul.f32 %v1158, 0.09090909
    %v1167 = vmul.f32 %v1163, 0.09090909
    %v1168 = vadd.f32 %v32, %v1166
    %v1169 = vadd.f32 %v33, %v1167
    %1170 = vmatprep.subr.mxu0 0.0
    %1171 = vmatpush1.msra.mxu0 %v1168
    %1172 = vmatprep.subr.mxu0 0.0
    %1173 = vmatpush1.msra.mxu0 %v1169
    %1174 = vmatprep.subr.mxu0 0.0
    %1175 = vmatpush1.msra.mxu0 0.0
    %1176 = vmatprep.subr.mxu0 0.0
    %1177 = vmatpush1.msra.mxu0 0.0
    %1178 = vmatprep.subr.mxu0 0.0
    %1179 = vmatpush1.msra.mxu0 0.0
    %1180 = vmatprep.subr.mxu0 0.0
    %1181 = vmatpush1.msra.mxu0 0.0
    %1182 = vmatprep.subr.mxu0 0.0
    %1183 = vmatpush1.msra.mxu0 0.0
    %1184 = vmatprep.subr.mxu0 0.0
    %1185 = vmatpush1.msra.mxu0 0.0
    %1186 = vmatprep.subr.mxu0 0.0
    %1187 = vmatpush1.msra.mxu0 0.0
    %1188 = vmatprep.subr.mxu0 0.0
    %1189 = vmatpush1.msra.mxu0 0.0
    %1190 = vmatprep.subr.mxu0 0.0
    %1191 = vmatpush1.msra.mxu0 0.0
    %1192 = vmatprep.subr.mxu0 0.0
    %1193 = vmatpush1.msra.mxu0 0.0
    %1194 = vmatprep.subr.mxu0 0.0
    %1195 = vmatpush1.msra.mxu0 0.0
    %1196 = vmatprep.subr.mxu0 0.0
    %1197 = vmatpush1.msra.mxu0 0.0
    %1198 = vmatprep.subr.mxu0 0.0
    %1199 = vmatpush1.msra.mxu0 0.0
    %1200 = vmatprep.subr.mxu0 0.0
    %1201 = vmatpush1.msra.mxu0 0.0
    %1202 = vmatprep.subr.mxu0 0.0
    %1203 = vmatpush1.msra.mxu0 0.0
    %1204 = vmatprep.subr.mxu0 0.0
    %1205 = vmatpush1.msra.mxu0 0.0
    %1206 = vmatprep.subr.mxu0 0.0
    %1207 = vmatpush1.msra.mxu0 0.0
    %1208 = vmatprep.subr.mxu0 0.0
    %1209 = vmatpush1.msra.mxu0 0.0
    %1210 = vmatprep.subr.mxu0 0.0
    %1211 = vmatpush1.msra.mxu0 0.0
    %1212 = vmatprep.subr.mxu0 0.0
    %1213 = vmatpush1.msra.mxu0 0.0
    %1214 = vmatprep.subr.mxu0 0.0
    %1215 = vmatpush1.msra.mxu0 0.0
    %1216 = vmatprep.subr.mxu0 0.0
    %1217 = vmatpush1.msra.mxu0 0.0
    %1218 = vmatprep.subr.mxu0 0.0
    %1219 = vmatpush1.msra.mxu0 0.0
    %1220 = vmatprep.subr.mxu0 0.0
    %1221 = vmatpush1.msra.mxu0 0.0
    %1222 = vmatprep.subr.mxu0 0.0
    %1223 = vmatpush1.msra.mxu0 0.0
    %1224 = vmatprep.subr.mxu0 0.0
    %1225 = vmatpush1.msra.mxu0 0.0
    %1226 = vmatprep.subr.mxu0 0.0
    %1227 = vmatpush1.msra.mxu0 0.0
    %1228 = vmatprep.subr.mxu0 0.0
    %1229 = vmatpush1.msra.mxu0 0.0
    %1230 = vmatprep.subr.mxu0 0.0
    %1231 = vmatpush1.msra.mxu0 0.0
    %1232 = vmatprep.subr.mxu0 0.0
    %1233 = vmatpush1.msra.mxu0 0.0
    %1234 = vmatprep.mubr.f32.mxu0 0.0
    %1235 = vmatmul.mubr.f32.gmra.mrb[0].mxu0 %v1086
    %v1236 = vpop.f32.mrb[0].mxu0
    %v1237 = vadd.f32 0.0, %v1236
    %v1238 = vpop.f32.mrb[0].mxu0
    %1239 = vmatprep.mubr.f32.mxu0 0.0
    %1240 = vmatmul.mubr.f32.gmra.mrb[0].mxu0 %v1089
    %v1241 = vpop.f32.mrb[0].mxu0
    %v1242 = vadd.f32 0.0, %v1241
    %v1243 = vpop.f32.mrb[0].mxu0
    %1244 = vdwg.mxu0
    %v1245 = vmul.f32 %v1237, 0.1
    %v1246 = vmul.f32 %v1242, 0.1
    %v1247 = vadd.f32 %v32, %v1245
    %v1248 = vadd.f32 %v33, %v1246
    %1249 = vmatprep.subr.mxu0 0.0
    %1250 = vmatpush1.msra.mxu0 %v1247
    %1251 = vmatprep.subr.mxu0 0.0
    %1252 = vmatpush1.msra.mxu0 %v1248
    %1253 = vmatprep.subr.mxu0 0.0
    %1254 = vmatpush1.msra.mxu0 0.0
    %1255 = vmatprep.subr.mxu0 0.0
    %1256 = vmatpush1.msra.mxu0 0.0
    %1257 = vmatprep.subr.mxu0 0.0
    %1258 = vmatpush1.msra.mxu0 0.0
    %1259 = vmatprep.subr.mxu0 0.0
    %1260 = vmatpush1.msra.mxu0 0.0
    %1261 = vmatprep.subr.mxu0 0.0
    %1262 = vmatpush1.msra.mxu0 0.0
    %1263 = vmatprep.subr.mxu0 0.0
    %1264 = vmatpush1.msra.mxu0 0.0
    %1265 = vmatprep.subr.mxu0 0.0
    %1266 = vmatpush1.msra.mxu0 0.0
    %1267 = vmatprep.subr.mxu0 0.0
    %1268 = vmatpush1.msra.mxu0 0.0
    %1269 = vmatprep.subr.mxu0 0.0
    %1270 = vmatpush1.msra.mxu0 0.0
    %1271 = vmatprep.subr.mxu0 0.0
    %1272 = vmatpush1.msra.mxu0 0.0
    %1273 = vmatprep.subr.mxu0 0.0
    %1274 = vmatpush1.msra.mxu0 0.0
    %1275 = vmatprep.subr.mxu0 0.0
    %1276 = vmatpush1.msra.mxu0 0.0
    %1277 = vmatprep.subr.mxu0 0.0
    %1278 = vmatpush1.msra.mxu0 0.0
    %1279 = vmatprep.subr.mxu0 0.0
    %1280 = vmatpush1.msra.mxu0 0.0
    %1281 = vmatprep.subr.mxu0 0.0
    %1282 = vmatpush1.msra.mxu0 0.0
    %1283 = vmatprep.subr.mxu0 0.0
    %1284 = vmatpush1.msra.mxu0 0.0
    %1285 = vmatprep.subr.mxu0 0.0
    %1286 = vmatpush1.msra.mxu0 0.0
    %1287 = vmatprep.subr.mxu0 0.0
    %1288 = vmatpush1.msra.mxu0 0.0
    %1289 = vmatprep.subr.mxu0 0.0
    %1290 = vmatpush1.msra.mxu0 0.0
    %1291 = vmatprep.subr.mxu0 0.0
    %1292 = vmatpush1.msra.mxu0 0.0
    %1293 = vmatprep.subr.mxu0 0.0
    %1294 = vmatpush1.msra.mxu0 0.0
    %1295 = vmatprep.subr.mxu0 0.0
    %1296 = vmatpush1.msra.mxu0 0.0
    %1297 = vmatprep.subr.mxu0 0.0
    %1298 = vmatpush1.msra.mxu0 0.0
    %1299 = vmatprep.subr.mxu0 0.0
    %1300 = vmatpush1.msra.mxu0 0.0
    %1301 = vmatprep.subr.mxu0 0.0
    %1302 = vmatpush1.msra.mxu0 0.0
    %1303 = vmatprep.subr.mxu0 0.0
    %1304 = vmatpush1.msra.mxu0 0.0
    %1305 = vmatprep.subr.mxu0 0.0
    %1306 = vmatpush1.msra.mxu0 0.0
    %1307 = vmatprep.subr.mxu0 0.0
    %1308 = vmatpush1.msra.mxu0 0.0
    %1309 = vmatprep.subr.mxu0 0.0
    %1310 = vmatpush1.msra.mxu0 0.0
    %1311 = vmatprep.subr.mxu0 0.0
    %1312 = vmatpush1.msra.mxu0 0.0
    %1313 = vmatprep.mubr.f32.mxu0 0.0
    %1314 = vmatmul.mubr.f32.gmra.mrb[0].mxu0 %v1086
    %v1315 = vpop.f32.mrb[0].mxu0
    %v1316 = vadd.f32 0.0, %v1315
    %v1317 = vpop.f32.mrb[0].mxu0
    %1318 = vmatprep.mubr.f32.mxu0 0.0
    %1319 = vmatmul.mubr.f32.gmra.mrb[0].mxu0 %v1089
    %v1320 = vpop.f32.mrb[0].mxu0
    %v1321 = vadd.f32 0.0, %v1320
    %v1322 = vpop.f32.mrb[0].mxu0
    %1323 = vdwg.mxu0
    %v1324 = vmul.f32 %v1316, 0.11111111
    %v1325 = vmul.f32 %v1321, 0.11111111
    %v1326 = vadd.f32 %v32, %v1324
    %v1327 = vadd.f32 %v33, %v1325
    %1328 = vmatprep.subr.mxu0 0.0
    %1329 = vmatpush1.msra.mxu0 %v1326
    %1330 = vmatprep.subr.mxu0 0.0
    %1331 = vmatpush1.msra.mxu0 %v1327
    %1332 = vmatprep.subr.mxu0 0.0
    %1333 = vmatpush1.msra.mxu0 0.0
    %1334 = vmatprep.subr.mxu0 0.0
    %1335 = vmatpush1.msra.mxu0 0.0
    %1336 = vmatprep.subr.mxu0 0.0
    %1337 = vmatpush1.msra.mxu0 0.0
    %1338 = vmatprep.subr.mxu0 0.0
    %1339 = vmatpush1.msra.mxu0 0.0
    %1340 = vmatprep.subr.mxu0 0.0
    %1341 = vmatpush1.msra.mxu0 0.0
    %1342 = vmatprep.subr.mxu0 0.0
    %1343 = vmatpush1.msra.mxu0 0.0
    %1344 = vmatprep.subr.mxu0 0.0
    %1345 = vmatpush1.msra.mxu0 0.0
    %1346 = vmatprep.subr.mxu0 0.0
    %1347 = vmatpush1.msra.mxu0 0.0
    %1348 = vmatprep.subr.mxu0 0.0
    %1349 = vmatpush1.msra.mxu0 0.0
    %1350 = vmatprep.subr.mxu0 0.0
    %1351 = vmatpush1.msra.mxu0 0.0
    %1352 = vmatprep.subr.mxu0 0.0
    %1353 = vmatpush1.msra.mxu0 0.0
    %1354 = vmatprep.subr.mxu0 0.0
    %1355 = vmatpush1.msra.mxu0 0.0
    %1356 = vmatprep.subr.mxu0 0.0
    %1357 = vmatpush1.msra.mxu0 0.0
    %1358 = vmatprep.subr.mxu0 0.0
    %1359 = vmatpush1.msra.mxu0 0.0
    %1360 = vmatprep.subr.mxu0 0.0
    %1361 = vmatpush1.msra.mxu0 0.0
    %1362 = vmatprep.subr.mxu0 0.0
    %1363 = vmatpush1.msra.mxu0 0.0
    %1364 = vmatprep.subr.mxu0 0.0
    %1365 = vmatpush1.msra.mxu0 0.0
    %1366 = vmatprep.subr.mxu0 0.0
    %1367 = vmatpush1.msra.mxu0 0.0
    %1368 = vmatprep.subr.mxu0 0.0
    %1369 = vmatpush1.msra.mxu0 0.0
    %1370 = vmatprep.subr.mxu0 0.0
    %1371 = vmatpush1.msra.mxu0 0.0
    %1372 = vmatprep.subr.mxu0 0.0
    %1373 = vmatpush1.msra.mxu0 0.0
    %1374 = vmatprep.subr.mxu0 0.0
    %1375 = vmatpush1.msra.mxu0 0.0
    %1376 = vmatprep.subr.mxu0 0.0
    %1377 = vmatpush1.msra.mxu0 0.0
    %1378 = vmatprep.subr.mxu0 0.0
    %1379 = vmatpush1.msra.mxu0 0.0
    %1380 = vmatprep.subr.mxu0 0.0
    %1381 = vmatpush1.msra.mxu0 0.0
    %1382 = vmatprep.subr.mxu0 0.0
    %1383 = vmatpush1.msra.mxu0 0.0
    %1384 = vmatprep.subr.mxu0 0.0
    %1385 = vmatpush1.msra.mxu0 0.0
    %1386 = vmatprep.subr.mxu0 0.0
    %1387 = vmatpush1.msra.mxu0 0.0
    %1388 = vmatprep.subr.mxu0 0.0
    %1389 = vmatpush1.msra.mxu0 0.0
    %1390 = vmatprep.subr.mxu0 0.0
    %1391 = vmatpush1.msra.mxu0 0.0
    %1392 = vmatprep.mubr.f32.mxu0 0.0
    %1393 = vmatmul.mubr.f32.gmra.mrb[0].mxu0 %v1086
    %v1394 = vpop.f32.mrb[0].mxu0
    %v1395 = vadd.f32 0.0, %v1394
    %v1396 = vpop.f32.mrb[0].mxu0
    %1397 = vmatprep.mubr.f32.mxu0 0.0
    %1398 = vmatmul.mubr.f32.gmra.mrb[0].mxu0 %v1089
    %v1399 = vpop.f32.mrb[0].mxu0
    %v1400 = vadd.f32 0.0, %v1399
    %v1401 = vpop.f32.mrb[0].mxu0
    %1402 = vdwg.mxu0
    %v1403 = vmul.f32 %v1395, 0.125
    %v1404 = vmul.f32 %v1400, 0.125
    %v1405 = vadd.f32 %v32, %v1403
    %v1406 = vadd.f32 %v33, %v1404
    %1407 = vmatprep.subr.mxu0 0.0
    %1408 = vmatpush1.msra.mxu0 %v1405
    %1409 = vmatprep.subr.mxu0 0.0
    %1410 = vmatpush1.msra.mxu0 %v1406
    %1411 = vmatprep.subr.mxu0 0.0
    %1412 = vmatpush1.msra.mxu0 0.0
    %1413 = vmatprep.subr.mxu0 0.0
    %1414 = vmatpush1.msra.mxu0 0.0
    %1415 = vmatprep.subr.mxu0 0.0
    %1416 = vmatpush1.msra.mxu0 0.0
    %1417 = vmatprep.subr.mxu0 0.0
    %1418 = vmatpush1.msra.mxu0 0.0
    %1419 = vmatprep.subr.mxu0 0.0
    %1420 = vmatpush1.msra.mxu0 0.0
    %1421 = vmatprep.subr.mxu0 0.0
    %1422 = vmatpush1.msra.mxu0 0.0
    %1423 = vmatprep.subr.mxu0 0.0
    %1424 = vmatpush1.msra.mxu0 0.0
    %1425 = vmatprep.subr.mxu0 0.0
    %1426 = vmatpush1.msra.mxu0 0.0
    %1427 = vmatprep.subr.mxu0 0.0
    %1428 = vmatpush1.msra.mxu0 0.0
    %1429 = vmatprep.subr.mxu0 0.0
    %1430 = vmatpush1.msra.mxu0 0.0
    %1431 = vmatprep.subr.mxu0 0.0
    %1432 = vmatpush1.msra.mxu0 0.0
    %1433 = vmatprep.subr.mxu0 0.0
    %1434 = vmatpush1.msra.mxu0 0.0
    %1435 = vmatprep.subr.mxu0 0.0
    %1436 = vmatpush1.msra.mxu0 0.0
    %1437 = vmatprep.subr.mxu0 0.0
    %1438 = vmatpush1.msra.mxu0 0.0
    %1439 = vmatprep.subr.mxu0 0.0
    %1440 = vmatpush1.msra.mxu0 0.0
    %1441 = vmatprep.subr.mxu0 0.0
    %1442 = vmatpush1.msra.mxu0 0.0
    %1443 = vmatprep.subr.mxu0 0.0
    %1444 = vmatpush1.msra.mxu0 0.0
    %1445 = vmatprep.subr.mxu0 0.0
    %1446 = vmatpush1.msra.mxu0 0.0
    %1447 = vmatprep.subr.mxu0 0.0
    %1448 = vmatpush1.msra.mxu0 0.0
    %1449 = vmatprep.subr.mxu0 0.0
    %1450 = vmatpush1.msra.mxu0 0.0
    %1451 = vmatprep.subr.mxu0 0.0
    %1452 = vmatpush1.msra.mxu0 0.0
    %1453 = vmatprep.subr.mxu0 0.0
    %1454 = vmatpush1.msra.mxu0 0.0
    %1455 = vmatprep.subr.mxu0 0.0
    %1456 = vmatpush1.msra.mxu0 0.0
    %1457 = vmatprep.subr.mxu0 0.0
    %1458 = vmatpush1.msra.mxu0 0.0
    %1459 = vmatprep.subr.mxu0 0.0
    %1460 = vmatpush1.msra.mxu0 0.0
    %1461 = vmatprep.subr.mxu0 0.0
    %1462 = vmatpush1.msra.mxu0 0.0
    %1463 = vmatprep.subr.mxu0 0.0
    %1464 = vmatpush1.msra.mxu0 0.0
    %1465 = vmatprep.subr.mxu0 0.0
    %1466 = vmatpush1.msra.mxu0 0.0
    %1467 = vmatprep.subr.mxu0 0.0
    %1468 = vmatpush1.msra.mxu0 0.0
    %1469 = vmatprep.subr.mxu0 0.0
    %1470 = vmatpush1.msra.mxu0 0.0
    %1471 = vmatprep.mubr.f32.mxu0 0.0
    %1472 = vmatmul.mubr.f32.gmra.mrb[0].mxu0 %v1086
    %v1473 = vpop.f32.mrb[0].mxu0
    %v1474 = vadd.f32 0.0, %v1473
    %v1475 = vpop.f32.mrb[0].mxu0
    %1476 = vmatprep.mubr.f32.mxu0 0.0
    %1477 = vmatmul.mubr.f32.gmra.mrb[0].mxu0 %v1089
    %v1478 = vpop.f32.mrb[0].mxu0
    %v1479 = vadd.f32 0.0, %v1478
    %v1480 = vpop.f32.mrb[0].mxu0
    %1481 = vdwg.mxu0
    %v1482 = vmul.f32 %v1474, 0.14285715
    %v1483 = vmul.f32 %v1479, 0.14285715
    %v1484 = vadd.f32 %v32, %v1482
    %v1485 = vadd.f32 %v33, %v1483
    %1486 = vmatprep.subr.mxu0 0.0
    %1487 = vmatpush1.msra.mxu0 %v1484
    %1488 = vmatprep.subr.mxu0 0.0
    %1489 = vmatpush1.msra.mxu0 %v1485
    %1490 = vmatprep.subr.mxu0 0.0
    %1491 = vmatpush1.msra.mxu0 0.0
    %1492 = vmatprep.subr.mxu0 0.0
    %1493 = vmatpush1.msra.mxu0 0.0
    %1494 = vmatprep.subr.mxu0 0.0
    %1495 = vmatpush1.msra.mxu0 0.0
    %1496 = vmatprep.subr.mxu0 0.0
    %1497 = vmatpush1.msra.mxu0 0.0
    %1498 = vmatprep.subr.mxu0 0.0
    %1499 = vmatpush1.msra.mxu0 0.0
    %1500 = vmatprep.subr.mxu0 0.0
    %1501 = vmatpush1.msra.mxu0 0.0
    %1502 = vmatprep.subr.mxu0 0.0
    %1503 = vmatpush1.msra.mxu0 0.0
    %1504 = vmatprep.subr.mxu0 0.0
    %1505 = vmatpush1.msra.mxu0 0.0
    %1506 = vmatprep.subr.mxu0 0.0
    %1507 = vmatpush1.msra.mxu0 0.0
    %1508 = vmatprep.subr.mxu0 0.0
    %1509 = vmatpush1.msra.mxu0 0.0
    %1510 = vmatprep.subr.mxu0 0.0
    %1511 = vmatpush1.msra.mxu0 0.0
    %1512 = vmatprep.subr.mxu0 0.0
    %1513 = vmatpush1.msra.mxu0 0.0
    %1514 = vmatprep.subr.mxu0 0.0
    %1515 = vmatpush1.msra.mxu0 0.0
    %1516 = vmatprep.subr.mxu0 0.0
    %1517 = vmatpush1.msra.mxu0 0.0
    %1518 = vmatprep.subr.mxu0 0.0
    %1519 = vmatpush1.msra.mxu0 0.0
    %1520 = vmatprep.subr.mxu0 0.0
    %1521 = vmatpush1.msra.mxu0 0.0
    %1522 = vmatprep.subr.mxu0 0.0
    %1523 = vmatpush1.msra.mxu0 0.0
    %1524 = vmatprep.subr.mxu0 0.0
    %1525 = vmatpush1.msra.mxu0 0.0
    %1526 = vmatprep.subr.mxu0 0.0
    %1527 = vmatpush1.msra.mxu0 0.0
    %1528 = vmatprep.subr.mxu0 0.0
    %1529 = vmatpush1.msra.mxu0 0.0
    %1530 = vmatprep.subr.mxu0 0.0
    %1531 = vmatpush1.msra.mxu0 0.0
    %1532 = vmatprep.subr.mxu0 0.0
    %1533 = vmatpush1.msra.mxu0 0.0
    %1534 = vmatprep.subr.mxu0 0.0
    %1535 = vmatpush1.msra.mxu0 0.0
    %1536 = vmatprep.subr.mxu0 0.0
    %1537 = vmatpush1.msra.mxu0 0.0
    %1538 = vmatprep.subr.mxu0 0.0
    %1539 = vmatpush1.msra.mxu0 0.0
    %1540 = vmatprep.subr.mxu0 0.0
    %1541 = vmatpush1.msra.mxu0 0.0
    %1542 = vmatprep.subr.mxu0 0.0
    %1543 = vmatpush1.msra.mxu0 0.0
    %1544 = vmatprep.subr.mxu0 0.0
    %1545 = vmatpush1.msra.mxu0 0.0
    %1546 = vmatprep.subr.mxu0 0.0
    %1547 = vmatpush1.msra.mxu0 0.0
    %1548 = vmatprep.subr.mxu0 0.0
    %1549 = vmatpush1.msra.mxu0 0.0
    %1550 = vmatprep.mubr.f32.mxu0 0.0
    %1551 = vmatmul.mubr.f32.gmra.mrb[0].mxu0 %v1086
    %v1552 = vpop.f32.mrb[0].mxu0
    %v1553 = vadd.f32 0.0, %v1552
    %v1554 = vpop.f32.mrb[0].mxu0
    %1555 = vmatprep.mubr.f32.mxu0 0.0
    %1556 = vmatmul.mubr.f32.gmra.mrb[0].mxu0 %v1089
    %v1557 = vpop.f32.mrb[0].mxu0
    %v1558 = vadd.f32 0.0, %v1557
    %v1559 = vpop.f32.mrb[0].mxu0
    %1560 = vdwg.mxu0
    %v1561 = vmul.f32 %v1553, 0.16666667
    %v1562 = vmul.f32 %v1558, 0.16666667
    %v1563 = vadd.f32 %v32, %v1561
    %v1564 = vadd.f32 %v33, %v1562
    %1565 = vmatprep.subr.mxu0 0.0
    %1566 = vmatpush1.msra.mxu0 %v1563
    %1567 = vmatprep.subr.mxu0 0.0
    %1568 = vmatpush1.msra.mxu0 %v1564
    %1569 = vmatprep.subr.mxu0 0.0
    %1570 = vmatpush1.msra.mxu0 0.0
    %1571 = vmatprep.subr.mxu0 0.0
    %1572 = vmatpush1.msra.mxu0 0.0
    %1573 = vmatprep.subr.mxu0 0.0
    %1574 = vmatpush1.msra.mxu0 0.0
    %1575 = vmatprep.subr.mxu0 0.0
    %1576 = vmatpush1.msra.mxu0 0.0
    %1577 = vmatprep.subr.mxu0 0.0
    %1578 = vmatpush1.msra.mxu0 0.0
    %1579 = vmatprep.subr.mxu0 0.0
    %1580 = vmatpush1.msra.mxu0 0.0
    %1581 = vmatprep.subr.mxu0 0.0
    %1582 = vmatpush1.msra.mxu0 0.0
    %1583 = vmatprep.subr.mxu0 0.0
    %1584 = vmatpush1.msra.mxu0 0.0
    %1585 = vmatprep.subr.mxu0 0.0
    %1586 = vmatpush1.msra.mxu0 0.0
    %1587 = vmatprep.subr.mxu0 0.0
    %1588 = vmatpush1.msra.mxu0 0.0
    %1589 = vmatprep.subr.mxu0 0.0
    %1590 = vmatpush1.msra.mxu0 0.0
    %1591 = vmatprep.subr.mxu0 0.0
    %1592 = vmatpush1.msra.mxu0 0.0
    %1593 = vmatprep.subr.mxu0 0.0
    %1594 = vmatpush1.msra.mxu0 0.0
    %1595 = vmatprep.subr.mxu0 0.0
    %1596 = vmatpush1.msra.mxu0 0.0
    %1597 = vmatprep.subr.mxu0 0.0
    %1598 = vmatpush1.msra.mxu0 0.0
    %1599 = vmatprep.subr.mxu0 0.0
    %1600 = vmatpush1.msra.mxu0 0.0
    %1601 = vmatprep.subr.mxu0 0.0
    %1602 = vmatpush1.msra.mxu0 0.0
    %1603 = vmatprep.subr.mxu0 0.0
    %1604 = vmatpush1.msra.mxu0 0.0
    %1605 = vmatprep.subr.mxu0 0.0
    %1606 = vmatpush1.msra.mxu0 0.0
    %1607 = vmatprep.subr.mxu0 0.0
    %1608 = vmatpush1.msra.mxu0 0.0
    %1609 = vmatprep.subr.mxu0 0.0
    %1610 = vmatpush1.msra.mxu0 0.0
    %1611 = vmatprep.subr.mxu0 0.0
    %1612 = vmatpush1.msra.mxu0 0.0
    %1613 = vmatprep.subr.mxu0 0.0
    %1614 = vmatpush1.msra.mxu0 0.0
    %1615 = vmatprep.subr.mxu0 0.0
    %1616 = vmatpush1.msra.mxu0 0.0
    %1617 = vmatprep.subr.mxu0 0.0
    %1618 = vmatpush1.msra.mxu0 0.0
    %1619 = vmatprep.subr.mxu0 0.0
    %1620 = vmatpush1.msra.mxu0 0.0
    %1621 = vmatprep.subr.mxu0 0.0
    %1622 = vmatpush1.msra.mxu0 0.0
    %1623 = vmatprep.subr.mxu0 0.0
    %1624 = vmatpush1.msra.mxu0 0.0
    %1625 = vmatprep.subr.mxu0 0.0
    %1626 = vmatpush1.msra.mxu0 0.0
    %1627 = vmatprep.subr.mxu0 0.0
    %1628 = vmatpush1.msra.mxu0 0.0
    %1629 = vmatprep.mubr.f32.mxu0 0.0
    %1630 = vmatmul.mubr.f32.gmra.mrb[0].mxu0 %v1086
    %v1631 = vpop.f32.mrb[0].mxu0
    %v1632 = vadd.f32 0.0, %v1631
    %v1633 = vpop.f32.mrb[0].mxu0
    %1634 = vmatprep.mubr.f32.mxu0 0.0
    %1635 = vmatmul.mubr.f32.gmra.mrb[0].mxu0 %v1089
    %v1636 = vpop.f32.mrb[0].mxu0
    %v1637 = vadd.f32 0.0, %v1636
    %v1638 = vpop.f32.mrb[0].mxu0
    %1639 = vdwg.mxu0
    %v1640 = vmul.f32 %v1632, 0.2
    %v1641 = vmul.f32 %v1637, 0.2
    %v1642 = vadd.f32 %v32, %v1640
    %v1643 = vadd.f32 %v33, %v1641
    %1644 = vmatprep.subr.mxu0 0.0
    %1645 = vmatpush1.msra.mxu0 %v1642
    %1646 = vmatprep.subr.mxu0 0.0
    %1647 = vmatpush1.msra.mxu0 %v1643
    %1648 = vmatprep.subr.mxu0 0.0
    %1649 = vmatpush1.msra.mxu0 0.0
    %1650 = vmatprep.subr.mxu0 0.0
    %1651 = vmatpush1.msra.mxu0 0.0
    %1652 = vmatprep.subr.mxu0 0.0
    %1653 = vmatpush1.msra.mxu0 0.0
    %1654 = vmatprep.subr.mxu0 0.0
    %1655 = vmatpush1.msra.mxu0 0.0
    %1656 = vmatprep.subr.mxu0 0.0
    %1657 = vmatpush1.msra.mxu0 0.0
    %1658 = vmatprep.subr.mxu0 0.0
    %1659 = vmatpush1.msra.mxu0 0.0
    %1660 = vmatprep.subr.mxu0 0.0
    %1661 = vmatpush1.msra.mxu0 0.0
    %1662 = vmatprep.subr.mxu0 0.0
    %1663 = vmatpush1.msra.mxu0 0.0
    %1664 = vmatprep.subr.mxu0 0.0
    %1665 = vmatpush1.msra.mxu0 0.0
    %1666 = vmatprep.subr.mxu0 0.0
    %1667 = vmatpush1.msra.mxu0 0.0
    %1668 = vmatprep.subr.mxu0 0.0
    %1669 = vmatpush1.msra.mxu0 0.0
    %1670 = vmatprep.subr.mxu0 0.0
    %1671 = vmatpush1.msra.mxu0 0.0
    %1672 = vmatprep.subr.mxu0 0.0
    %1673 = vmatpush1.msra.mxu0 0.0
    %1674 = vmatprep.subr.mxu0 0.0
    %1675 = vmatpush1.msra.mxu0 0.0
    %1676 = vmatprep.subr.mxu0 0.0
    %1677 = vmatpush1.msra.mxu0 0.0
    %1678 = vmatprep.subr.mxu0 0.0
    %1679 = vmatpush1.msra.mxu0 0.0
    %1680 = vmatprep.subr.mxu0 0.0
    %1681 = vmatpush1.msra.mxu0 0.0
    %1682 = vmatprep.subr.mxu0 0.0
    %1683 = vmatpush1.msra.mxu0 0.0
    %1684 = vmatprep.subr.mxu0 0.0
    %1685 = vmatpush1.msra.mxu0 0.0
    %1686 = vmatprep.subr.mxu0 0.0
    %1687 = vmatpush1.msra.mxu0 0.0
    %1688 = vmatprep.subr.mxu0 0.0
    %1689 = vmatpush1.msra.mxu0 0.0
    %1690 = vmatprep.subr.mxu0 0.0
    %1691 = vmatpush1.msra.mxu0 0.0
    %1692 = vmatprep.subr.mxu0 0.0
    %1693 = vmatpush1.msra.mxu0 0.0
    %1694 = vmatprep.subr.mxu0 0.0
    %1695 = vmatpush1.msra.mxu0 0.0
    %1696 = vmatprep.subr.mxu0 0.0
    %1697 = vmatpush1.msra.mxu0 0.0
    %1698 = vmatprep.subr.mxu0 0.0
    %1699 = vmatpush1.msra.mxu0 0.0
    %1700 = vmatprep.subr.mxu0 0.0
    %1701 = vmatpush1.msra.mxu0 0.0
    %1702 = vmatprep.subr.mxu0 0.0
    %1703 = vmatpush1.msra.mxu0 0.0
    %1704 = vmatprep.subr.mxu0 0.0
    %1705 = vmatpush1.msra.mxu0 0.0
    %1706 = vmatprep.subr.mxu0 0.0
    %1707 = vmatpush1.msra.mxu0 0.0
    %1708 = vmatprep.mubr.f32.mxu0 0.0
    %1709 = vmatmul.mubr.f32.gmra.mrb[0].mxu0 %v1086
    %v1710 = vpop.f32.mrb[0].mxu0
    %v1711 = vadd.f32 0.0, %v1710
    %v1712 = vpop.f32.mrb[0].mxu0
    %1713 = vmatprep.mubr.f32.mxu0 0.0
    %1714 = vmatmul.mubr.f32.gmra.mrb[0].mxu0 %v1089
    %v1715 = vpop.f32.mrb[0].mxu0
    %v1716 = vadd.f32 0.0, %v1715
    %v1717 = vpop.f32.mrb[0].mxu0
    %1718 = vdwg.mxu0
    %v1719 = vmul.f32 %v1711, 0.25
    %v1720 = vmul.f32 %v1716, 0.25
    %v1721 = vadd.f32 %v32, %v1719
    %v1722 = vadd.f32 %v33, %v1720
    %1723 = vmatprep.subr.mxu0 0.0
    %1724 = vmatpush1.msra.mxu0 %v1721
    %1725 = vmatprep.subr.mxu0 0.0
    %1726 = vmatpush1.msra.mxu0 %v1722
    %1727 = vmatprep.subr.mxu0 0.0
    %1728 = vmatpush1.msra.mxu0 0.0
    %1729 = vmatprep.subr.mxu0 0.0
    %1730 = vmatpush1.msra.mxu0 0.0
    %1731 = vmatprep.subr.mxu0 0.0
    %1732 = vmatpush1.msra.mxu0 0.0
    %1733 = vmatprep.subr.mxu0 0.0
    %1734 = vmatpush1.msra.mxu0 0.0
    %1735 = vmatprep.subr.mxu0 0.0
    %1736 = vmatpush1.msra.mxu0 0.0
    %1737 = vmatprep.subr.mxu0 0.0
    %1738 = vmatpush1.msra.mxu0 0.0
    %1739 = vmatprep.subr.mxu0 0.0
    %1740 = vmatpush1.msra.mxu0 0.0
    %1741 = vmatprep.subr.mxu0 0.0
    %1742 = vmatpush1.msra.mxu0 0.0
    %1743 = vmatprep.subr.mxu0 0.0
    %1744 = vmatpush1.msra.mxu0 0.0
    %1745 = vmatprep.subr.mxu0 0.0
    %1746 = vmatpush1.msra.mxu0 0.0
    %1747 = vmatprep.subr.mxu0 0.0
    %1748 = vmatpush1.msra.mxu0 0.0
    %1749 = vmatprep.subr.mxu0 0.0
    %1750 = vmatpush1.msra.mxu0 0.0
    %1751 = vmatprep.subr.mxu0 0.0
    %1752 = vmatpush1.msra.mxu0 0.0
    %1753 = vmatprep.subr.mxu0 0.0
    %1754 = vmatpush1.msra.mxu0 0.0
    %1755 = vmatprep.subr.mxu0 0.0
    %1756 = vmatpush1.msra.mxu0 0.0
    %1757 = vmatprep.subr.mxu0 0.0
    %1758 = vmatpush1.msra.mxu0 0.0
    %1759 = vmatprep.subr.mxu0 0.0
    %1760 = vmatpush1.msra.mxu0 0.0
    %1761 = vmatprep.subr.mxu0 0.0
    %1762 = vmatpush1.msra.mxu0 0.0
    %1763 = vmatprep.subr.mxu0 0.0
    %1764 = vmatpush1.msra.mxu0 0.0
    %1765 = vmatprep.subr.mxu0 0.0
    %1766 = vmatpush1.msra.mxu0 0.0
    %1767 = vmatprep.subr.mxu0 0.0
    %1768 = vmatpush1.msra.mxu0 0.0
    %1769 = vmatprep.subr.mxu0 0.0
    %1770 = vmatpush1.msra.mxu0 0.0
    %1771 = vmatprep.subr.mxu0 0.0
    %1772 = vmatpush1.msra.mxu0 0.0
    %1773 = vmatprep.subr.mxu0 0.0
    %1774 = vmatpush1.msra.mxu0 0.0
    %1775 = vmatprep.subr.mxu0 0.0
    %1776 = vmatpush1.msra.mxu0 0.0
    %1777 = vmatprep.subr.mxu0 0.0
    %1778 = vmatpush1.msra.mxu0 0.0
    %1779 = vmatprep.subr.mxu0 0.0
    %1780 = vmatpush1.msra.mxu0 0.0
    %1781 = vmatprep.subr.mxu0 0.0
    %1782 = vmatpush1.msra.mxu0 0.0
    %1783 = vmatprep.subr.mxu0 0.0
    %1784 = vmatpush1.msra.mxu0 0.0
    %1785 = vmatprep.subr.mxu0 0.0
    %1786 = vmatpush1.msra.mxu0 0.0
    %1787 = vmatprep.mubr.f32.mxu0 0.0
    %1788 = vmatmul.mubr.f32.gmra.mrb[0].mxu0 %v1086
    %v1789 = vpop.f32.mrb[0].mxu0
    %v1790 = vadd.f32 0.0, %v1789
    %v1791 = vpop.f32.mrb[0].mxu0
    %1792 = vmatprep.mubr.f32.mxu0 0.0
    %1793 = vmatmul.mubr.f32.gmra.mrb[0].mxu0 %v1089
    %v1794 = vpop.f32.mrb[0].mxu0
    %v1795 = vadd.f32 0.0, %v1794
    %v1796 = vpop.f32.mrb[0].mxu0
    %1797 = vdwg.mxu0
    %v1798 = vmul.f32 %v1790, 0.33333334
    %v1799 = vmul.f32 %v1795, 0.33333334
    %v1800 = vadd.f32 %v32, %v1798
    %v1801 = vadd.f32 %v33, %v1799
    %1802 = vmatprep.subr.mxu0 0.0
    %1803 = vmatpush1.msra.mxu0 %v1800
    %1804 = vmatprep.subr.mxu0 0.0
    %1805 = vmatpush1.msra.mxu0 %v1801
    %1806 = vmatprep.subr.mxu0 0.0
    %1807 = vmatpush1.msra.mxu0 0.0
    %1808 = vmatprep.subr.mxu0 0.0
    %1809 = vmatpush1.msra.mxu0 0.0
    %1810 = vmatprep.subr.mxu0 0.0
    %1811 = vmatpush1.msra.mxu0 0.0
    %1812 = vmatprep.subr.mxu0 0.0
    %1813 = vmatpush1.msra.mxu0 0.0
    %1814 = vmatprep.subr.mxu0 0.0
    %1815 = vmatpush1.msra.mxu0 0.0
    %1816 = vmatprep.subr.mxu0 0.0
    %1817 = vmatpush1.msra.mxu0 0.0
    %1818 = vmatprep.subr.mxu0 0.0
    %1819 = vmatpush1.msra.mxu0 0.0
    %1820 = vmatprep.subr.mxu0 0.0
    %1821 = vmatpush1.msra.mxu0 0.0
    %1822 = vmatprep.subr.mxu0 0.0
    %1823 = vmatpush1.msra.mxu0 0.0
    %1824 = vmatprep.subr.mxu0 0.0
    %1825 = vmatpush1.msra.mxu0 0.0
    %1826 = vmatprep.subr.mxu0 0.0
    %1827 = vmatpush1.msra.mxu0 0.0
    %1828 = vmatprep.subr.mxu0 0.0
    %1829 = vmatpush1.msra.mxu0 0.0
    %1830 = vmatprep.subr.mxu0 0.0
    %1831 = vmatpush1.msra.mxu0 0.0
    %1832 = vmatprep.subr.mxu0 0.0
    %1833 = vmatpush1.msra.mxu0 0.0
    %1834 = vmatprep.subr.mxu0 0.0
    %1835 = vmatpush1.msra.mxu0 0.0
    %1836 = vmatprep.subr.mxu0 0.0
    %1837 = vmatpush1.msra.mxu0 0.0
    %1838 = vmatprep.subr.mxu0 0.0
    %1839 = vmatpush1.msra.mxu0 0.0
    %1840 = vmatprep.subr.mxu0 0.0
    %1841 = vmatpush1.msra.mxu0 0.0
    %1842 = vmatprep.subr.mxu0 0.0
    %1843 = vmatpush1.msra.mxu0 0.0
    %1844 = vmatprep.subr.mxu0 0.0
    %1845 = vmatpush1.msra.mxu0 0.0
    %1846 = vmatprep.subr.mxu0 0.0
    %1847 = vmatpush1.msra.mxu0 0.0
    %1848 = vmatprep.subr.mxu0 0.0
    %1849 = vmatpush1.msra.mxu0 0.0
    %1850 = vmatprep.subr.mxu0 0.0
    %1851 = vmatpush1.msra.mxu0 0.0
    %1852 = vmatprep.subr.mxu0 0.0
    %1853 = vmatpush1.msra.mxu0 0.0
    %1854 = vmatprep.subr.mxu0 0.0
    %1855 = vmatpush1.msra.mxu0 0.0
    %1856 = vmatprep.subr.mxu0 0.0
    %1857 = vmatpush1.msra.mxu0 0.0
    %1858 = vmatprep.subr.mxu0 0.0
    %1859 = vmatpush1.msra.mxu0 0.0
    %1860 = vmatprep.subr.mxu0 0.0
    %1861 = vmatpush1.msra.mxu0 0.0
    %1862 = vmatprep.subr.mxu0 0.0
    %1863 = vmatpush1.msra.mxu0 0.0
    %1864 = vmatprep.subr.mxu0 0.0
    %1865 = vmatpush1.msra.mxu0 0.0
    %1866 = vmatprep.mubr.f32.mxu0 0.0
    %1867 = vmatmul.mubr.f32.gmra.mrb[0].mxu0 %v1086
    %v1868 = vpop.f32.mrb[0].mxu0
    %v1869 = vadd.f32 0.0, %v1868
    %v1870 = vpop.f32.mrb[0].mxu0
    %1871 = vmatprep.mubr.f32.mxu0 0.0
    %1872 = vmatmul.mubr.f32.gmra.mrb[0].mxu0 %v1089
    %v1873 = vpop.f32.mrb[0].mxu0
    %v1874 = vadd.f32 0.0, %v1873
    %v1875 = vpop.f32.mrb[0].mxu0
    %1876 = vdwg.mxu0
    %v1877 = vmul.f32 %v1869, 0.5
    %v1878 = vmul.f32 %v1874, 0.5
    %v1879 = vadd.f32 %v32, %v1877
    %v1880 = vadd.f32 %v33, %v1878
    %1881 = vmatprep.subr.mxu0 0.0
    %1882 = vmatpush1.msra.mxu0 %v1879
    %1883 = vmatprep.subr.mxu0 0.0
    %1884 = vmatpush1.msra.mxu0 %v1880
    %1885 = vmatprep.subr.mxu0 0.0
    %1886 = vmatpush1.msra.mxu0 0.0
    %1887 = vmatprep.subr.mxu0 0.0
    %1888 = vmatpush1.msra.mxu0 0.0
    %1889 = vmatprep.subr.mxu0 0.0
    %1890 = vmatpush1.msra.mxu0 0.0
    %1891 = vmatprep.subr.mxu0 0.0
    %1892 = vmatpush1.msra.mxu0 0.0
    %1893 = vmatprep.subr.mxu0 0.0
    %1894 = vmatpush1.msra.mxu0 0.0
    %1895 = vmatprep.subr.mxu0 0.0
    %1896 = vmatpush1.msra.mxu0 0.0
    %1897 = vmatprep.subr.mxu0 0.0
    %1898 = vmatpush1.msra.mxu0 0.0
    %1899 = vmatprep.subr.mxu0 0.0
    %1900 = vmatpush1.msra.mxu0 0.0
    %1901 = vmatprep.subr.mxu0 0.0
    %1902 = vmatpush1.msra.mxu0 0.0
    %1903 = vmatprep.subr.mxu0 0.0
    %1904 = vmatpush1.msra.mxu0 0.0
    %1905 = vmatprep.subr.mxu0 0.0
    %1906 = vmatpush1.msra.mxu0 0.0
    %1907 = vmatprep.subr.mxu0 0.0
    %1908 = vmatpush1.msra.mxu0 0.0
    %1909 = vmatprep.subr.mxu0 0.0
    %1910 = vmatpush1.msra.mxu0 0.0
    %1911 = vmatprep.subr.mxu0 0.0
    %1912 = vmatpush1.msra.mxu0 0.0
    %1913 = vmatprep.subr.mxu0 0.0
    %1914 = vmatpush1.msra.mxu0 0.0
    %1915 = vmatprep.subr.mxu0 0.0
    %1916 = vmatpush1.msra.mxu0 0.0
    %1917 = vmatprep.subr.mxu0 0.0
    %1918 = vmatpush1.msra.mxu0 0.0
    %1919 = vmatprep.subr.mxu0 0.0
    %1920 = vmatpush1.msra.mxu0 0.0
    %1921 = vmatprep.subr.mxu0 0.0
    %1922 = vmatpush1.msra.mxu0 0.0
    %1923 = vmatprep.subr.mxu0 0.0
    %1924 = vmatpush1.msra.mxu0 0.0
    %1925 = vmatprep.subr.mxu0 0.0
    %1926 = vmatpush1.msra.mxu0 0.0
    %1927 = vmatprep.subr.mxu0 0.0
    %1928 = vmatpush1.msra.mxu0 0.0
    %1929 = vmatprep.subr.mxu0 0.0
    %1930 = vmatpush1.msra.mxu0 0.0
    %1931 = vmatprep.subr.mxu0 0.0
    %1932 = vmatpush1.msra.mxu0 0.0
    %1933 = vmatprep.subr.mxu0 0.0
    %1934 = vmatpush1.msra.mxu0 0.0
    %1935 = vmatprep.subr.mxu0 0.0
    %1936 = vmatpush1.msra.mxu0 0.0
    %1937 = vmatprep.subr.mxu0 0.0
    %1938 = vmatpush1.msra.mxu0 0.0
    %1939 = vmatprep.subr.mxu0 0.0
    %1940 = vmatpush1.msra.mxu0 0.0
    %1941 = vmatprep.subr.mxu0 0.0
    %1942 = vmatpush1.msra.mxu0 0.0
    %1943 = vmatprep.subr.mxu0 0.0
    %1944 = vmatpush1.msra.mxu0 0.0
    %1945 = vmatprep.mubr.f32.mxu0 0.0
    %1946 = vmatmul.mubr.f32.gmra.mrb[0].mxu0 %v1086
    %v1947 = vpop.f32.mrb[0].mxu0
    %v1948 = vadd.f32 0.0, %v1947
    %v1949 = vpop.f32.mrb[0].mxu0
    %1950 = vmatprep.mubr.f32.mxu0 0.0
    %1951 = vmatmul.mubr.f32.gmra.mrb[0].mxu0 %v1089
    %v1952 = vpop.f32.mrb[0].mxu0
    %v1953 = vadd.f32 0.0, %v1952
    %v1954 = vpop.f32.mrb[0].mxu0
    %1955 = vdwg.mxu0
    %v1956 = vadd.f32 %v32, %v1948
    %v1957 = vadd.f32 %v33, %v1953
    %v1959 = vsel %vm40, %v1956, 0
    %v1962 = vsel %vm40, %v1957, 0
    %1964 = vmatprep.subr.mxu0 0.0
    %1965 = vmatpush1.msra.mxu0 %v1956
    %1966 = vmatprep.subr.mxu0 0.0
    %1967 = vmatpush1.msra.mxu0 %v1957
    %1968 = vmatprep.subr.mxu0 0.0
    %1969 = vmatpush1.msra.mxu0 0.0
    %1970 = vmatprep.subr.mxu0 0.0
    %1971 = vmatpush1.msra.mxu0 0.0
    %1972 = vmatprep.subr.mxu0 0.0
    %1973 = vmatpush1.msra.mxu0 0.0
    %1974 = vmatprep.subr.mxu0 0.0
    %1975 = vmatpush1.msra.mxu0 0.0
    %1976 = vmatprep.subr.mxu0 0.0
    %1977 = vmatpush1.msra.mxu0 0.0
    %1978 = vmatprep.subr.mxu0 0.0
    %1979 = vmatpush1.msra.mxu0 0.0
    %1980 = vmatprep.subr.mxu0 0.0
    %1981 = vmatpush1.msra.mxu0 0.0
    %1982 = vmatprep.subr.mxu0 0.0
    %1983 = vmatpush1.msra.mxu0 0.0
    %1984 = vmatprep.subr.mxu0 0.0
    %1985 = vmatpush1.msra.mxu0 0.0
    %1986 = vmatprep.subr.mxu0 0.0
    %1987 = vmatpush1.msra.mxu0 0.0
    %1988 = vmatprep.subr.mxu0 0.0
    %1989 = vmatpush1.msra.mxu0 0.0
    %1990 = vmatprep.subr.mxu0 0.0
    %1991 = vmatpush1.msra.mxu0 0.0
    %1992 = vmatprep.subr.mxu0 0.0
    %1993 = vmatpush1.msra.mxu0 0.0
    %1994 = vmatprep.subr.mxu0 0.0
    %1995 = vmatpush1.msra.mxu0 0.0
    %1996 = vmatprep.subr.mxu0 0.0
    %1997 = vmatpush1.msra.mxu0 0.0
    %1998 = vmatprep.subr.mxu0 0.0
    %1999 = vmatpush1.msra.mxu0 0.0
    %2000 = vmatprep.subr.mxu0 0.0
    %2001 = vmatpush1.msra.mxu0 0.0
    %2002 = vmatprep.subr.mxu0 0.0
    %2003 = vmatpush1.msra.mxu0 0.0
    %2004 = vmatprep.subr.mxu0 0.0
    %2005 = vmatpush1.msra.mxu0 0.0
    %2006 = vmatprep.subr.mxu0 0.0
    %2007 = vmatpush1.msra.mxu0 0.0
    %2008 = vmatprep.subr.mxu0 0.0
    %2009 = vmatpush1.msra.mxu0 0.0
    %2010 = vmatprep.subr.mxu0 0.0
    %2011 = vmatpush1.msra.mxu0 0.0
    %2012 = vmatprep.subr.mxu0 0.0
    %2013 = vmatpush1.msra.mxu0 0.0
    %2014 = vmatprep.subr.mxu0 0.0
    %2015 = vmatpush1.msra.mxu0 0.0
    %2016 = vmatprep.subr.mxu0 0.0
    %2017 = vmatpush1.msra.mxu0 0.0
    %2018 = vmatprep.subr.mxu0 0.0
    %2019 = vmatpush1.msra.mxu0 0.0
    %2020 = vmatprep.subr.mxu0 0.0
    %2021 = vmatpush1.msra.mxu0 0.0
    %2022 = vmatprep.subr.mxu0 0.0
    %2023 = vmatpush1.msra.mxu0 0.0
    %2024 = vmatprep.subr.mxu0 0.0
    %2025 = vmatpush1.msra.mxu0 0.0
    %2026 = vmatprep.subr.mxu0 0.0
    %2027 = vmatpush1.msra.mxu0 0.0
    %2028 = vmatprep.mubr.f32.mxu0 0.0
    %2029 = vmatmul.mubr.f32.gmra.mrb[0].mxu0 %v1959
    %v2030 = vpop.f32.mrb[0].mxu0
    %v2031 = vadd.f32 0.0, %v2030
    %v2032 = vpop.f32.mrb[0].mxu0
    %2033 = vmatprep.mubr.f32.mxu0 0.0
    %2034 = vmatmul.mubr.f32.gmra.mrb[0].mxu0 %v1962
    %v2035 = vpop.f32.mrb[0].mxu0
    %v2036 = vadd.f32 0.0, %v2035
    %v2037 = vpop.f32.mrb[0].mxu0
    %2038 = vdwg.mxu0
    %v2040 = vsel %vm40, %v2031, 0
    %v2043 = vsel %vm40, %v2036, 0
    %2045 = vmatprep.subr.mxu0 0.0
    %2046 = vmatpush1.msra.mxu0 %v2031
    %2047 = vmatprep.subr.mxu0 0.0
    %2048 = vmatpush1.msra.mxu0 %v2036
    %2049 = vmatprep.subr.mxu0 0.0
    %2050 = vmatpush1.msra.mxu0 0.0
    %2051 = vmatprep.subr.mxu0 0.0
    %2052 = vmatpush1.msra.mxu0 0.0
    %2053 = vmatprep.subr.mxu0 0.0
    %2054 = vmatpush1.msra.mxu0 0.0
    %2055 = vmatprep.subr.mxu0 0.0
    %2056 = vmatpush1.msra.mxu0 0.0
    %2057 = vmatprep.subr.mxu0 0.0
    %2058 = vmatpush1.msra.mxu0 0.0
    %2059 = vmatprep.subr.mxu0 0.0
    %2060 = vmatpush1.msra.mxu0 0.0
    %2061 = vmatprep.subr.mxu0 0.0
    %2062 = vmatpush1.msra.mxu0 0.0
    %2063 = vmatprep.subr.mxu0 0.0
    %2064 = vmatpush1.msra.mxu0 0.0
    %2065 = vmatprep.subr.mxu0 0.0
    %2066 = vmatpush1.msra.mxu0 0.0
    %2067 = vmatprep.subr.mxu0 0.0
    %2068 = vmatpush1.msra.mxu0 0.0
    %2069 = vmatprep.subr.mxu0 0.0
    %2070 = vmatpush1.msra.mxu0 0.0
    %2071 = vmatprep.subr.mxu0 0.0
    %2072 = vmatpush1.msra.mxu0 0.0
    %2073 = vmatprep.subr.mxu0 0.0
    %2074 = vmatpush1.msra.mxu0 0.0
    %2075 = vmatprep.subr.mxu0 0.0
    %2076 = vmatpush1.msra.mxu0 0.0
    %2077 = vmatprep.subr.mxu0 0.0
    %2078 = vmatpush1.msra.mxu0 0.0
    %2079 = vmatprep.subr.mxu0 0.0
    %2080 = vmatpush1.msra.mxu0 0.0
    %2081 = vmatprep.subr.mxu0 0.0
    %2082 = vmatpush1.msra.mxu0 0.0
    %2083 = vmatprep.subr.mxu0 0.0
    %2084 = vmatpush1.msra.mxu0 0.0
    %2085 = vmatprep.subr.mxu0 0.0
    %2086 = vmatpush1.msra.mxu0 0.0
    %2087 = vmatprep.subr.mxu0 0.0
    %2088 = vmatpush1.msra.mxu0 0.0
    %2089 = vmatprep.subr.mxu0 0.0
    %2090 = vmatpush1.msra.mxu0 0.0
    %2091 = vmatprep.subr.mxu0 0.0
    %2092 = vmatpush1.msra.mxu0 0.0
    %2093 = vmatprep.subr.mxu0 0.0
    %2094 = vmatpush1.msra.mxu0 0.0
    %2095 = vmatprep.subr.mxu0 0.0
    %2096 = vmatpush1.msra.mxu0 0.0
    %2097 = vmatprep.subr.mxu0 0.0
    %2098 = vmatpush1.msra.mxu0 0.0
    %2099 = vmatprep.subr.mxu0 0.0
    %2100 = vmatpush1.msra.mxu0 0.0
    %2101 = vmatprep.subr.mxu0 0.0
    %2102 = vmatpush1.msra.mxu0 0.0
    %2103 = vmatprep.subr.mxu0 0.0
    %2104 = vmatpush1.msra.mxu0 0.0
    %2105 = vmatprep.subr.mxu0 0.0
    %2106 = vmatpush1.msra.mxu0 0.0
    %2107 = vmatprep.subr.mxu0 0.0
    %2108 = vmatpush1.msra.mxu0 0.0
    %2109 = vmatprep.mubr.f32.mxu0 0.0
    %2110 = vmatmul.mubr.f32.gmra.mrb[0].mxu0 %v2040
    %v2111 = vpop.f32.mrb[0].mxu0
    %v2112 = vadd.f32 0.0, %v2111
    %v2113 = vpop.f32.mrb[0].mxu0
    %2114 = vmatprep.mubr.f32.mxu0 0.0
    %2115 = vmatmul.mubr.f32.gmra.mrb[0].mxu0 %v2043
    %v2116 = vpop.f32.mrb[0].mxu0
    %v2117 = vadd.f32 0.0, %v2116
    %v2118 = vpop.f32.mrb[0].mxu0
    %2119 = vdwg.mxu0
    %s2120 = scalar_lea.vmem [#allocation5], 16
    %2121 = vst.msk [vmem:[%s2120] sm:$0xff] %vm40, %v2112
    %2122 = vst.msk [vmem:[%s2120 + $0x8] sm:$0xff] %vm40, %v2117
    // Predicated region
    $region10: #{tpu_custom_call.1} parent=1 // pred_check
      _
    $region11: #{tpu_custom_call.1} parent=1 // pred_check_branch
      %2124 = sbr.rel (0) target = $region13
    $region12: #{tpu_custom_call.1} parent=1 // pred_region
      %s2126 = ssub.s32 512, 512
      %2127 = vsyncadd [#allocation4], %s2126
      %s2128 = sshll.u32 [#allocation5], 4
      %s2129 = int_to_ptr.vmem [resolvable:$true] %s2128
      %2134 = dma.vmem_to_hbm [thread:$0]  %s2129, 512, %s1, [#allocation4], 128, 128, 8
    $region13: #{tpu_custom_call.1} parent=1 // pred_fallthru
      _
    // Predicated region
    $region14: #{tpu_custom_call.1} parent=1 // pred_check
      _
    $region15: #{tpu_custom_call.1} parent=1 // pred_check_branch
      %2136 = sbr.rel (0) target = $region17
    $region16: #{tpu_custom_call.1} parent=1 // pred_region
      %2137 = dma.done [#allocation4], 512
    $region17: #{tpu_custom_call.1} parent=1 // pred_fallthru
      _
    %2138 = vsyncpa [#allocation3], 1
    %2139 = vsyncpa [#allocation4], 1

</llo_original>
